<compile_context>
chip_gen: v7x
topology: tpu7x:2x2x1
jax: 0.10.0
libtpu: 0.0.40
codegen_flags: <defaults>
</compile_context>

<pallas_src>
import functools

import jax
import jax.numpy as jnp
from jax.experimental import pallas as pl
from jax.experimental.pallas import tpu as pltpu

LANES = 128
_PADEXTRA = 8   # one f32 sublane tile of guard rows at each end of the staging buffer


def _round_up(x, m):
    return (x + m - 1) // m * m


def _fold_bn(gamma, beta, mean, var, eps=1e-5):
    scale = gamma / jnp.sqrt(var + eps)
    bias = beta - mean * scale
    return scale.astype(jnp.float32), bias.astype(jnp.float32)


def _pad2d(w, rows, cols):
    return jnp.zeros((rows, cols), w.dtype).at[: w.shape[0], : w.shape[1]].set(w)


def _pad_bias(b, cols):
    return jnp.zeros((1, cols), jnp.float32).at[0, : b.shape[0]].set(b)


def _pick_band_rows(H, d):
    # ~4 bands per image when possible (pipeline depth / megacore), each band at
    # least `d` rows so the conv2 halo comes from the neighbouring band.
    for nb in (4, 8, 2):
        hb = H // nb
        if H % nb == 0 and hb >= max(d, 1):
            return hb
    return H


# ----------------------------------------------------------------------------
# Fused Bottleneck kernel: one (image, row-band) per grid step, all in VMEM.
# ----------------------------------------------------------------------------
def _make_bottleneck_kernel(W, Hb, dilation, compute_dtype):
    d = dilation
    HWb = Hb * W
    PADROWS = (Hb + 2 * d) * W            # flattened rows of the conv2 staging window

    def kernel(x_ref, w1_ref, b1_ref, w2_ref, b2_ref, w3_ref, b3_ref, o_ref, pad_ref):
        band = pl.program_id(1)
        n_bands = pl.num_programs(1)
        Cin = x_ref.shape[-1]
        Pp = w1_ref.shape[-1]
        out_ch = w3_ref.shape[-1]
        row0 = band * Hb                  # first image row of this band

        # conv1 (1x1, BN scale folded into w1) + bias + relu on `nrows` image rows,
        # staged (flattened, f32) into pad_ref at flat row offset `dst`.
        def conv1_rows(r0, nrows, dst):
            xs = x_ref[0, pl.ds(r0, nrows), :, :].reshape(nrows * W, Cin)
            h = jnp.dot(xs.astype(compute_dtype), w1_ref[...],
                        preferred_element_type=jnp.float32)
            pad_ref[pl.ds(dst, nrows * W), :] = jnp.maximum(h + b1_ref[...], 0.0)

        # Zero ONLY the halo + guard rows (band interior is fully overwritten below).
        zero = jnp.zeros((_PADEXTRA + d * W, Pp), jnp.float32)
        pad_ref[pl.ds(0, _PADEXTRA + d * W), :] = zero
        pad_ref[pl.ds(_PADEXTRA + (d + Hb) * W, _PADEXTRA + d * W), :] = zero

        conv1_rows(row0, Hb, _PADEXTRA + d * W)          # band interior

        @pl.when(band > 0)                               # top halo rows (inside image)
        def _():
            conv1_rows(row0 - d, d, _PADEXTRA)

        @pl.when(band < n_bands - 1)                     # bottom halo rows (inside image)
        def _():
            conv1_rows(row0 + Hb, d, _PADEXTRA + (d + Hb) * W)

        # conv2 (3x3, stride 1, padding=dilation, dilation=d):
        # 3 MXU dots of K=3*Pp (the 3 row taps concatenated along K).  Each column
        # shift is ONE statically-offset window load (lowers to an aligned load + a
        # single cross-sublane shift) plus an iota column mask - no per-tap relayouts
        # and no 9-way f32 VPU accumulation.
        col = jax.lax.broadcasted_iota(jnp.int32, (PADROWS, Pp), 0) % W
        acc = jnp.broadcast_to(b2_ref[...], (HWb, Pp))   # bias folded into accumulator
        for kw in range(3):
            kj = (kw - 1) * d
            window = pad_ref[pl.ds(_PADEXTRA + kj, PADROWS), :]
            if kj != 0:                                  # zero columns shifted across rows
                window = jnp.where((col + kj >= 0) & (col + kj < W), window, 0.0)
            taps = jnp.concatenate(
                [window[a * d * W: a * d * W + HWb] for a in range(3)], axis=1)
            acc = acc + jnp.dot(taps.astype(compute_dtype), w2_ref[kw],
                                preferred_element_type=jnp.float32)
        h2 = jnp.maximum(acc, 0.0)                       # (HWb, Pp) f32

        # conv3 (1x1) + bias + identity residual (f32, straight from x) + relu.
        res = x_ref[0, pl.ds(row0, Hb), :, :].reshape(HWb, Cin).astype(jnp.float32)
        h3 = jnp.dot(h2.astype(compute_dtype), w3_ref[...],
                     preferred_element_type=jnp.float32)
        out = jnp.maximum(h3 + b3_ref[...] + res, 0.0)
        o_ref[0] = out.reshape(Hb, W, out_ch).astype(o_ref.dtype)

    return kernel


# ----------------------------------------------------------------------------
# Wrapper: layout plumbing (NCHW<->NHWC), BN folding, weight padding to 128 lanes.
# ----------------------------------------------------------------------------
@functools.partial(jax.jit, static_argnames=("stride", "dilation", "compute_dtype"))
def bottleneck_forward(x_nchw, params, stride=1, dilation=1,
                       compute_dtype=jnp.bfloat16):
    """Fused Pallas Bottleneck forward.  x_nchw: (N, inplanes, H, W), downsample=None."""
    N, Cin, H, W = x_nchw.shape
    planes = params["w1_oihw"].shape[0]
    out_ch = 4 * planes
    d = dilation
    # downsample=None -> identity residual is only valid for stride==1, Cin==4*planes.
    assert stride == 1 and Cin == out_ch
    assert W % 8 == 0                      # f32 staging reshapes / stores stay layout no-ops
    assert 1 <= d <= _PADEXTRA and d < W

    Pp = _round_up(planes, LANES)
    Hb = _pick_band_rows(H, d)
    n_bands = H // Hb

    # NHWC, TRUE channel count, original dtype (no host-side padding / casting).
    x = jnp.transpose(x_nchw, (0, 2, 3, 1))

    # Fold BN scale into the weights; pad only the VMEM-side dims to 128 lanes (zeros
    # in padded weight/bias entries keep padded channels at exactly 0 through relu).
    s1, bb1 = _fold_bn(params["bn1_gamma"], params["bn1_beta"],
                       params["bn1_mean"], params["bn1_var"])
    w1 = _pad2d(params["w1_oihw"][:, :, 0, 0].T * s1[None, :], Cin, Pp).astype(compute_dtype)
    b1 = _pad_bias(bb1, Pp)

    s2, bb2 = _fold_bn(params["bn2_gamma"], params["bn2_beta"],
                       params["bn2_mean"], params["bn2_var"])
    w2_cols = []
    for kw in range(3):                    # kernel column index; K-order = [kh=0, kh=1, kh=2]
        rows = [_pad2d(params["w2_oihw"][:, :, kh, kw].T * s2[None, :], Pp, Pp)
                for kh in range(3)]
        w2_cols.append(jnp.concatenate(rows, axis=0))
    w2 = jnp.stack(w2_cols, axis=0).astype(compute_dtype)      # (3, 3*Pp, Pp)
    b2 = _pad_bias(bb2, Pp)

    s3, bb3 = _fold_bn(params["bn3_gamma"], params["bn3_beta"],
                       params["bn3_mean"], params["bn3_var"])
    w3 = _pad2d(params["w3_oihw"][:, :, 0, 0].T * s3[None, :], Pp, out_ch).astype(compute_dtype)
    b3 = _pad_bias(bb3, out_ch)

    flops = 2 * N * H * W * (Cin * planes + 9 * planes * planes + planes * out_ch)
    bytes_accessed = (x.size * x.dtype.itemsize
                      + N * H * W * out_ch * jnp.dtype(compute_dtype).itemsize
                      + sum(int(a.size) * a.dtype.itemsize
                            for a in (w1, b1, w2, b2, w3, b3)))
    cost = pl.CostEstimate(flops=flops, transcendentals=0,
                           bytes_accessed=int(bytes_accessed))

    kernel = _make_bottleneck_kernel(W, Hb, d, compute_dtype)
    out = pl.pallas_call(
        kernel,
        grid=(N, n_bands),
        in_specs=[
            pl.BlockSpec((1, H, W, Cin), lambda n, b: (n, 0, 0, 0)),   # constant over bands
            pl.BlockSpec((Cin, Pp), lambda n, b: (0, 0)),
            pl.BlockSpec((1, Pp), lambda n, b: (0, 0)),
            pl.BlockSpec((3, 3 * Pp, Pp), lambda n, b: (0, 0, 0)),
            pl.BlockSpec((1, Pp), lambda n, b: (0, 0)),
            pl.BlockSpec((Pp, out_ch), lambda n, b: (0, 0)),
            pl.BlockSpec((1, out_ch), lambda n, b: (0, 0)),
        ],
        out_specs=pl.BlockSpec((1, Hb, W, out_ch), lambda n, b: (n, b, 0, 0)),
        out_shape=jax.ShapeDtypeStruct((N, H, W, out_ch), compute_dtype),
        scratch_shapes=[
            pltpu.VMEM(((Hb + 2 * d) * W + 2 * _PADEXTRA, Pp), jnp.float32)],
        compiler_params=pltpu.CompilerParams(
            dimension_semantics=("parallel", "parallel")),
        cost_estimate=cost,
    )(x, w1, b1, w2, b2, w3, b3)

    return jnp.transpose(out, (0, 3, 1, 2))                     # back to NCHW


# ----------------------------------------------------------------------------
# Deterministic parameters (PyTorch OIHW conv weights, BN stats).
# ----------------------------------------------------------------------------
def make_params(key, inplanes, planes):
    ks = jax.random.split(key, 6)
    p = {
        "w1_oihw": jax.random.normal(ks[0], (planes, inplanes, 1, 1), jnp.float32) * 0.1,
        "w2_oihw": jax.random.normal(ks[1], (planes, planes, 3, 3), jnp.float32) * 0.1,
        "w3_oihw": jax.random.normal(ks[2], (planes * 4, planes, 1, 1), jnp.float32) * 0.1,
    }
    for name, c, k in (("bn1", planes, ks[3]), ("bn2", planes, ks[4]),
                       ("bn3", planes * 4, ks[5])):
        kg, kb, km, kv = jax.random.split(k, 4)
        p[name + "_gamma"] = jax.random.uniform(kg, (c,), jnp.float32, 0.5, 1.5)
        p[name + "_beta"] = jax.random.normal(kb, (c,), jnp.float32) * 0.1
        p[name + "_mean"] = jax.random.normal(km, (c,), jnp.float32) * 0.1
        p[name + "_var"] = jax.random.uniform(kv, (c,), jnp.float32, 0.5, 1.5)
    return p


# ----------------------------------------------------------------------------
# Pure-JAX reference (mirrors the PyTorch forward exactly) for validation.
# ----------------------------------------------------------------------------
def reference_bottleneck(x, p, stride, dilation, eps=1e-5):
    def bn(o, pre):
        sh = (1, -1, 1, 1)
        return ((o - p[pre + "_mean"].reshape(sh))
                / jnp.sqrt(p[pre + "_var"].reshape(sh) + eps)
                * p[pre + "_gamma"].reshape(sh) + p[pre + "_beta"].reshape(sh))

    def conv(o, w, s, d, pad):
        return jax.lax.conv_general_dilated(
            o, w, (s, s), [(pad, pad), (pad, pad)], rhs_dilation=(d, d),
            dimension_numbers=("NCHW", "OIHW", "NCHW"))

    out = jax.nn.relu(bn(conv(x, p["w1_oihw"], 1, 1, 0), "bn1"))
    out = jax.nn.relu(bn(conv(out, p["w2_oihw"], stride, dilation, dilation), "bn2"))
    out = bn(conv(out, p["w3_oihw"], 1, 1, 0), "bn3")
    return jax.nn.relu(out + x)


if __name__ == "__main__":
    key = jax.random.PRNGKey(0)
    k_x, k_p = jax.random.split(key)

    inplanes, planes = 32, 8          # inplanes == planes * expansion -> identity residual
    N, H, W = 2, 16, 16
    x = jax.random.normal(k_x, (N, inplanes, H, W), jnp.float32)
    params = make_params(k_p, inplanes, planes)

    # f32 path: tight correctness check of the fused structure.
    # bf16 path: the performance dtype (bf16 MXU operands + bf16 output).
    for compute_dtype, atol, rtol in ((jnp.float32, 2e-3, 2e-3),
                                      (jnp.bfloat16, 7.5e-2, 7.5e-2)):
        for dilation in (1, 2):
            out = bottleneck_forward(x, params, stride=1, dilation=dilation,
                                     compute_dtype=compute_dtype)
            out = jax.block_until_ready(out)
            ref = reference_bottleneck(x, params, 1, dilation)
            assert out.shape == ref.shape == (N, planes * 4, H, W)
            out32 = out.astype(jnp.float32)
            err = float(jnp.max(jnp.abs(out32 - ref)))
            assert jnp.allclose(out32, ref, atol=atol, rtol=rtol), (
                str(compute_dtype), dilation, err)

    print("KERNEL_OK")
</pallas_src>

<mosaic_0001>
module attributes {stable_mosaic.version = 11 : i64} {
  func.func @kernel(%arg0: i32, %arg1: i32, %arg2: memref<1x16x16x32xf32, #tpu.memory_space<vmem>>, %arg3: memref<32x128xf32, #tpu.memory_space<vmem>>, %arg4: memref<1x128xf32, #tpu.memory_space<vmem>>, %arg5: memref<3x384x128xf32, #tpu.memory_space<vmem>>, %arg6: memref<1x128xf32, #tpu.memory_space<vmem>>, %arg7: memref<128x32xf32, #tpu.memory_space<vmem>>, %arg8: memref<1x32xf32, #tpu.memory_space<vmem>>, %arg9: memref<1x4x16x32xf32, #tpu.memory_space<vmem>>, %arg10: memref<112x128xf32, #tpu.memory_space<vmem>>) attributes {dimension_semantics = [#tpu.dimension_semantics<parallel>, #tpu.dimension_semantics<parallel>], iteration_bounds = array<i64: 2, 4>, scalar_prefetch = 0 : i64, scratch_operands = 1 : i64, tpu.core_type = #tpu.core_type<tc>, window_params = [{transform_indices = @transform_0, window_bounds = array<i64: 1, 16, 16, 32>}, {pipeline_mode = #tpu.pipeline_mode<synchronous>, transform_indices = @transform_1, window_bounds = array<i64: 32, 128>}, {pipeline_mode = #tpu.pipeline_mode<synchronous>, transform_indices = @transform_2, window_bounds = array<i64: 1, 128>}, {pipeline_mode = #tpu.pipeline_mode<synchronous>, transform_indices = @transform_3, window_bounds = array<i64: 3, 384, 128>}, {pipeline_mode = #tpu.pipeline_mode<synchronous>, transform_indices = @transform_4, window_bounds = array<i64: 1, 128>}, {pipeline_mode = #tpu.pipeline_mode<synchronous>, transform_indices = @transform_5, window_bounds = array<i64: 128, 32>}, {pipeline_mode = #tpu.pipeline_mode<synchronous>, transform_indices = @transform_6, window_bounds = array<i64: 1, 32>}, {transform_indices = @transform_7, window_bounds = array<i64: 1, 4, 16, 32>}]} {
    %c4_i32 = arith.constant 4 : i32
    %0 = arith.muli %arg1, %c4_i32 : i32
    %cst = arith.constant 0.000000e+00 : f32
    %1 = vector.broadcast %cst : f32 to vector<24x128xf32>
    %c0 = arith.constant 0 : index
    %c0_0 = arith.constant 0 : index
    %2 = vector.load %arg10[%c0, %c0_0] : memref<112x128xf32, #tpu.memory_space<vmem>>, vector<24x128xf32>
    tpu.vector_store %arg10[%c0, %c0_0], %1 {strides = array<i32>} : memref<112x128xf32, #tpu.memory_space<vmem>>, vector<24x128xf32>,
    %c88 = arith.constant 88 : index
    %c0_1 = arith.constant 0 : index
    %3 = vector.load %arg10[%c88, %c0_1] : memref<112x128xf32, #tpu.memory_space<vmem>>, vector<24x128xf32>
    tpu.vector_store %arg10[%c88, %c0_1], %1 {strides = array<i32>} : memref<112x128xf32, #tpu.memory_space<vmem>>, vector<24x128xf32>,
    %c0_2 = arith.constant 0 : index
    %4 = arith.index_cast %0 : i32 to index
    %c0_3 = arith.constant 0 : index
    %c0_4 = arith.constant 0 : index
    %5 = vector.load %arg2[%c0_2, %4, %c0_3, %c0_4] : memref<1x16x16x32xf32, #tpu.memory_space<vmem>>, vector<1x4x16x32xf32>
    %6 = vector.shape_cast %5 : vector<1x4x16x32xf32> to vector<4x16x32xf32>
    %7 = vector.shape_cast %6 : vector<4x16x32xf32> to vector<64x32xf32>
    %c0_5 = arith.constant 0 : index
    %c0_6 = arith.constant 0 : index
    %8 = vector.load %arg3[%c0_5, %c0_6] : memref<32x128xf32, #tpu.memory_space<vmem>>, vector<32x128xf32>
    %cst_7 = arith.constant dense<0.000000e+00> : vector<64x128xf32>
    %9 = tpu.matmul %7, %8, %cst_7 {dimension_numbers = #tpu.dot_dimension_numbers<[1], [0], [0], [1], [0, 0, 1, 1], [], []>} : vector<64x32xf32>, vector<32x128xf32>, vector<64x128xf32> -> vector<64x128xf32>
    %c0_8 = arith.constant 0 : index
    %c0_9 = arith.constant 0 : index
    %10 = vector.load %arg4[%c0_8, %c0_9] : memref<1x128xf32, #tpu.memory_space<vmem>>, vector<1x128xf32>
    %11 = vector.broadcast %10 : vector<1x128xf32> to vector<64x128xf32>
    %12 = arith.addf %9, %11 : vector<64x128xf32>
    %cst_10 = arith.constant 0.000000e+00 : f32
    %13 = vector.broadcast %cst_10 : f32 to vector<64x128xf32>
    %14 = arith.maximumf %12, %13 : vector<64x128xf32>
    %c24 = arith.constant 24 : index
    %c0_11 = arith.constant 0 : index
    %15 = vector.load %arg10[%c24, %c0_11] : memref<112x128xf32, #tpu.memory_space<vmem>>, vector<64x128xf32>
    tpu.vector_store %arg10[%c24, %c0_11], %14 {strides = array<i32>} : memref<112x128xf32, #tpu.memory_space<vmem>>, vector<64x128xf32>,
    %c0_i32 = arith.constant 0 : i32
    %16 = arith.cmpi sgt, %arg1, %c0_i32 : i32
    %17 = arith.extui %16 : i1 to i32
    %c0_i32_12 = arith.constant 0 : i32
    %18 = arith.cmpi ne, %17, %c0_i32_12 : i32
    scf.if %18 {
      %c1_i32_56 = arith.constant 1 : i32
      %109 = arith.subi %0, %c1_i32_56 : i32
      %c0_57 = arith.constant 0 : index
      %110 = arith.index_cast %109 : i32 to index
      %c0_58 = arith.constant 0 : index
      %c0_59 = arith.constant 0 : index
      %111 = vector.load %arg2[%c0_57, %110, %c0_58, %c0_59] : memref<1x16x16x32xf32, #tpu.memory_space<vmem>>, vector<1x1x16x32xf32>
      %112 = vector.shape_cast %111 : vector<1x1x16x32xf32> to vector<1x16x32xf32>
      %113 = vector.shape_cast %112 : vector<1x16x32xf32> to vector<16x32xf32>
      %c0_60 = arith.constant 0 : index
      %c0_61 = arith.constant 0 : index
      %114 = vector.load %arg3[%c0_60, %c0_61] : memref<32x128xf32, #tpu.memory_space<vmem>>, vector<32x128xf32>
      %cst_62 = arith.constant dense<0.000000e+00> : vector<16x128xf32>
      %115 = tpu.matmul %113, %114, %cst_62 {dimension_numbers = #tpu.dot_dimension_numbers<[1], [0], [0], [1], [0, 0, 1, 1], [], []>} : vector<16x32xf32>, vector<32x128xf32>, vector<16x128xf32> -> vector<16x128xf32>
      %c0_63 = arith.constant 0 : index
      %c0_64 = arith.constant 0 : index
      %116 = vector.load %arg4[%c0_63, %c0_64] : memref<1x128xf32, #tpu.memory_space<vmem>>, vector<1x128xf32>
      %117 = vector.broadcast %116 : vector<1x128xf32> to vector<16x128xf32>
      %118 = arith.addf %115, %117 : vector<16x128xf32>
      %cst_65 = arith.constant 0.000000e+00 : f32
      %119 = vector.broadcast %cst_65 : f32 to vector<16x128xf32>
      %120 = arith.maximumf %118, %119 : vector<16x128xf32>
      %c8_66 = arith.constant 8 : index
      %c0_67 = arith.constant 0 : index
      %121 = vector.load %arg10[%c8_66, %c0_67] : memref<112x128xf32, #tpu.memory_space<vmem>>, vector<16x128xf32>
      tpu.vector_store %arg10[%c8_66, %c0_67], %120 {strides = array<i32>} : memref<112x128xf32, #tpu.memory_space<vmem>>, vector<16x128xf32>,
    } else {
    }
    %c3_i32 = arith.constant 3 : i32
    %19 = arith.cmpi slt, %arg1, %c3_i32 : i32
    %20 = arith.extui %19 : i1 to i32
    %c0_i32_13 = arith.constant 0 : i32
    %21 = arith.cmpi ne, %20, %c0_i32_13 : i32
    scf.if %21 {
      %c4_i32_56 = arith.constant 4 : i32
      %109 = arith.addi %0, %c4_i32_56 : i32
      %c0_57 = arith.constant 0 : index
      %110 = arith.index_cast %109 : i32 to index
      %c0_58 = arith.constant 0 : index
      %c0_59 = arith.constant 0 : index
      %111 = vector.load %arg2[%c0_57, %110, %c0_58, %c0_59] : memref<1x16x16x32xf32, #tpu.memory_space<vmem>>, vector<1x1x16x32xf32>
      %112 = vector.shape_cast %111 : vector<1x1x16x32xf32> to vector<1x16x32xf32>
      %113 = vector.shape_cast %112 : vector<1x16x32xf32> to vector<16x32xf32>
      %c0_60 = arith.constant 0 : index
      %c0_61 = arith.constant 0 : index
      %114 = vector.load %arg3[%c0_60, %c0_61] : memref<32x128xf32, #tpu.memory_space<vmem>>, vector<32x128xf32>
      %cst_62 = arith.constant dense<0.000000e+00> : vector<16x128xf32>
      %115 = tpu.matmul %113, %114, %cst_62 {dimension_numbers = #tpu.dot_dimension_numbers<[1], [0], [0], [1], [0, 0, 1, 1], [], []>} : vector<16x32xf32>, vector<32x128xf32>, vector<16x128xf32> -> vector<16x128xf32>
      %c0_63 = arith.constant 0 : index
      %c0_64 = arith.constant 0 : index
      %116 = vector.load %arg4[%c0_63, %c0_64] : memref<1x128xf32, #tpu.memory_space<vmem>>, vector<1x128xf32>
      %117 = vector.broadcast %116 : vector<1x128xf32> to vector<16x128xf32>
      %118 = arith.addf %115, %117 : vector<16x128xf32>
      %cst_65 = arith.constant 0.000000e+00 : f32
      %119 = vector.broadcast %cst_65 : f32 to vector<16x128xf32>
      %120 = arith.maximumf %118, %119 : vector<16x128xf32>
      %c88_66 = arith.constant 88 : index
      %c0_67 = arith.constant 0 : index
      %121 = vector.load %arg10[%c88_66, %c0_67] : memref<112x128xf32, #tpu.memory_space<vmem>>, vector<16x128xf32>
      tpu.vector_store %arg10[%c88_66, %c0_67], %120 {strides = array<i32>} : memref<112x128xf32, #tpu.memory_space<vmem>>, vector<16x128xf32>,
    } else {
    }
    %22 = tpu.iota {dimensions = array<i32: 0>} : vector<96x128xi32>
    %c16_i32 = arith.constant 16 : i32
    %c0_i32_14 = arith.constant 0 : i32
    %23 = arith.cmpi eq, %c16_i32, %c0_i32_14 : i32
    %c1_i32 = arith.constant 1 : i32
    %24 = arith.select %23, %c1_i32, %c16_i32 : i32
    %25 = vector.broadcast %24 : i32 to vector<96x128xi32>
    %26 = arith.remsi %22, %25 : vector<96x128xi32>
    %c0_i32_15 = arith.constant 0 : i32
    %27 = vector.broadcast %c0_i32_15 : i32 to vector<96x128xi32>
    %28 = arith.cmpi ne, %26, %27 : vector<96x128xi32>
    %c0_i32_16 = arith.constant 0 : i32
    %29 = vector.broadcast %c0_i32_16 : i32 to vector<96x128xi32>
    %30 = arith.cmpi slt, %26, %29 : vector<96x128xi32>
    %c0_i32_17 = arith.constant 0 : i32
    %31 = arith.cmpi slt, %24, %c0_i32_17 : i32
    %32 = vector.broadcast %31 : i1 to vector<96x128xi1>
    %33 = vector.broadcast %32 : vector<96x128xi1> to vector<96x128xi1>
    %34 = arith.xori %30, %33 : vector<96x128xi1>
    %35 = arith.andi %34, %28 : vector<96x128xi1>
    %36 = vector.broadcast %24 : i32 to vector<96x128xi32>
    %37 = arith.addi %26, %36 : vector<96x128xi32>
    %38 = arith.select %35, %37, %26 : vector<96x128xi1>, vector<96x128xi32>
    %c0_18 = arith.constant 0 : index
    %c0_19 = arith.constant 0 : index
    %39 = vector.load %arg6[%c0_18, %c0_19] : memref<1x128xf32, #tpu.memory_space<vmem>>, vector<1x128xf32>
    %40 = vector.shape_cast %39 : vector<1x128xf32> to vector<1x128xf32>
    %41 = vector.broadcast %40 : vector<1x128xf32> to vector<64x128xf32>
    %c7 = arith.constant 7 : index
    %c0_20 = arith.constant 0 : index
    %42 = vector.load %arg10[%c7, %c0_20] : memref<112x128xf32, #tpu.memory_space<vmem>>, vector<96x128xf32>
    %c-1_i32 = arith.constant -1 : i32
    %43 = vector.broadcast %c-1_i32 : i32 to vector<96x128xi32>
    %44 = arith.addi %38, %43 : vector<96x128xi32>
    %c0_i32_21 = arith.constant 0 : i32
    %45 = vector.broadcast %c0_i32_21 : i32 to vector<96x128xi32>
    %46 = arith.cmpi sge, %44, %45 : vector<96x128xi32>
    %c-1_i32_22 = arith.constant -1 : i32
    %47 = vector.broadcast %c-1_i32_22 : i32 to vector<96x128xi32>
    %48 = arith.addi %38, %47 : vector<96x128xi32>
    %c16_i32_23 = arith.constant 16 : i32
    %49 = vector.broadcast %c16_i32_23 : i32 to vector<96x128xi32>
    %50 = arith.cmpi slt, %48, %49 : vector<96x128xi32>
    %51 = arith.andi %46, %50 : vector<96x128xi1>
    %cst_24 = arith.constant 0.000000e+00 : f32
    %52 = vector.broadcast %cst_24 : f32 to vector<96x128xf32>
    %53 = arith.select %51, %42, %52 : vector<96x128xi1>, vector<96x128xf32>
    %54 = vector.extract_strided_slice %53 {offsets = [0, 0], sizes = [64, 128], strides = [1, 1]} : vector<96x128xf32> to vector<64x128xf32>
    %55 = vector.extract_strided_slice %53 {offsets = [16, 0], sizes = [64, 128], strides = [1, 1]} : vector<96x128xf32> to vector<64x128xf32>
    %56 = vector.extract_strided_slice %53 {offsets = [32, 0], sizes = [64, 128], strides = [1, 1]} : vector<96x128xf32> to vector<64x128xf32>
    %57 = tpu.concatenate %54, %55, %56 in 1 : vector<64x128xf32>, vector<64x128xf32>, vector<64x128xf32> -> vector<64x384xf32>
    %c0_25 = arith.constant 0 : index
    %c0_26 = arith.constant 0 : index
    %c0_27 = arith.constant 0 : index
    %58 = vector.load %arg5[%c0_25, %c0_26, %c0_27] : memref<3x384x128xf32, #tpu.memory_space<vmem>>, vector<1x384x128xf32>
    %59 = vector.shape_cast %58 : vector<1x384x128xf32> to vector<384x128xf32>
    %cst_28 = arith.constant dense<0.000000e+00> : vector<64x128xf32>
    %60 = tpu.matmul %57, %59, %cst_28 {dimension_numbers = #tpu.dot_dimension_numbers<[1], [0], [0], [1], [0, 0, 1, 1], [], []>} : vector<64x384xf32>, vector<384x128xf32>, vector<64x128xf32> -> vector<64x128xf32>
    %61 = arith.addf %41, %60 : vector<64x128xf32>
    %c8 = arith.constant 8 : index
    %c0_29 = arith.constant 0 : index
    %62 = vector.load %arg10[%c8, %c0_29] : memref<112x128xf32, #tpu.memory_space<vmem>>, vector<96x128xf32>
    %63 = vector.extract_strided_slice %62 {offsets = [0, 0], sizes = [64, 128], strides = [1, 1]} : vector<96x128xf32> to vector<64x128xf32>
    %64 = vector.extract_strided_slice %62 {offsets = [16, 0], sizes = [64, 128], strides = [1, 1]} : vector<96x128xf32> to vector<64x128xf32>
    %65 = vector.extract_strided_slice %62 {offsets = [32, 0], sizes = [64, 128], strides = [1, 1]} : vector<96x128xf32> to vector<64x128xf32>
    %66 = tpu.concatenate %63, %64, %65 in 1 : vector<64x128xf32>, vector<64x128xf32>, vector<64x128xf32> -> vector<64x384xf32>
    %c1 = arith.constant 1 : index
    %c0_30 = arith.constant 0 : index
    %c0_31 = arith.constant 0 : index
    %67 = vector.load %arg5[%c1, %c0_30, %c0_31] : memref<3x384x128xf32, #tpu.memory_space<vmem>>, vector<1x384x128xf32>
    %68 = vector.shape_cast %67 : vector<1x384x128xf32> to vector<384x128xf32>
    %cst_32 = arith.constant dense<0.000000e+00> : vector<64x128xf32>
    %69 = tpu.matmul %66, %68, %cst_32 {dimension_numbers = #tpu.dot_dimension_numbers<[1], [0], [0], [1], [0, 0, 1, 1], [], []>} : vector<64x384xf32>, vector<384x128xf32>, vector<64x128xf32> -> vector<64x128xf32>
    %70 = arith.addf %61, %69 : vector<64x128xf32>
    %c9 = arith.constant 9 : index
    %c0_33 = arith.constant 0 : index
    %71 = vector.load %arg10[%c9, %c0_33] : memref<112x128xf32, #tpu.memory_space<vmem>>, vector<96x128xf32>
    %c1_i32_34 = arith.constant 1 : i32
    %72 = vector.broadcast %c1_i32_34 : i32 to vector<96x128xi32>
    %73 = arith.addi %38, %72 : vector<96x128xi32>
    %c0_i32_35 = arith.constant 0 : i32
    %74 = vector.broadcast %c0_i32_35 : i32 to vector<96x128xi32>
    %75 = arith.cmpi sge, %73, %74 : vector<96x128xi32>
    %c1_i32_36 = arith.constant 1 : i32
    %76 = vector.broadcast %c1_i32_36 : i32 to vector<96x128xi32>
    %77 = arith.addi %38, %76 : vector<96x128xi32>
    %c16_i32_37 = arith.constant 16 : i32
    %78 = vector.broadcast %c16_i32_37 : i32 to vector<96x128xi32>
    %79 = arith.cmpi slt, %77, %78 : vector<96x128xi32>
    %80 = arith.andi %75, %79 : vector<96x128xi1>
    %cst_38 = arith.constant 0.000000e+00 : f32
    %81 = vector.broadcast %cst_38 : f32 to vector<96x128xf32>
    %82 = arith.select %80, %71, %81 : vector<96x128xi1>, vector<96x128xf32>
    %83 = vector.extract_strided_slice %82 {offsets = [0, 0], sizes = [64, 128], strides = [1, 1]} : vector<96x128xf32> to vector<64x128xf32>
    %84 = vector.extract_strided_slice %82 {offsets = [16, 0], sizes = [64, 128], strides = [1, 1]} : vector<96x128xf32> to vector<64x128xf32>
    %85 = vector.extract_strided_slice %82 {offsets = [32, 0], sizes = [64, 128], strides = [1, 1]} : vector<96x128xf32> to vector<64x128xf32>
    %86 = tpu.concatenate %83, %84, %85 in 1 : vector<64x128xf32>, vector<64x128xf32>, vector<64x128xf32> -> vector<64x384xf32>
    %c2 = arith.constant 2 : index
    %c0_39 = arith.constant 0 : index
    %c0_40 = arith.constant 0 : index
    %87 = vector.load %arg5[%c2, %c0_39, %c0_40] : memref<3x384x128xf32, #tpu.memory_space<vmem>>, vector<1x384x128xf32>
    %88 = vector.shape_cast %87 : vector<1x384x128xf32> to vector<384x128xf32>
    %cst_41 = arith.constant dense<0.000000e+00> : vector<64x128xf32>
    %89 = tpu.matmul %86, %88, %cst_41 {dimension_numbers = #tpu.dot_dimension_numbers<[1], [0], [0], [1], [0, 0, 1, 1], [], []>} : vector<64x384xf32>, vector<384x128xf32>, vector<64x128xf32> -> vector<64x128xf32>
    %90 = arith.addf %70, %89 : vector<64x128xf32>
    %cst_42 = arith.constant 0.000000e+00 : f32
    %91 = vector.broadcast %cst_42 : f32 to vector<64x128xf32>
    %92 = arith.maximumf %90, %91 : vector<64x128xf32>
    %c0_43 = arith.constant 0 : index
    %93 = arith.index_cast %0 : i32 to index
    %c0_44 = arith.constant 0 : index
    %c0_45 = arith.constant 0 : index
    %94 = vector.load %arg2[%c0_43, %93, %c0_44, %c0_45] : memref<1x16x16x32xf32, #tpu.memory_space<vmem>>, vector<1x4x16x32xf32>
    %95 = vector.shape_cast %94 : vector<1x4x16x32xf32> to vector<4x16x32xf32>
    %96 = vector.shape_cast %95 : vector<4x16x32xf32> to vector<64x32xf32>
    %c0_46 = arith.constant 0 : index
    %c0_47 = arith.constant 0 : index
    %97 = vector.load %arg7[%c0_46, %c0_47] : memref<128x32xf32, #tpu.memory_space<vmem>>, vector<128x32xf32>
    %cst_48 = arith.constant dense<0.000000e+00> : vector<64x32xf32>
    %98 = tpu.matmul %92, %97, %cst_48 {dimension_numbers = #tpu.dot_dimension_numbers<[1], [0], [0], [1], [0, 0, 1, 1], [], []>} : vector<64x128xf32>, vector<128x32xf32>, vector<64x32xf32> -> vector<64x32xf32>
    %c0_49 = arith.constant 0 : index
    %c0_50 = arith.constant 0 : index
    %99 = vector.load %arg8[%c0_49, %c0_50] : memref<1x32xf32, #tpu.memory_space<vmem>>, vector<1x32xf32>
    %100 = vector.broadcast %99 : vector<1x32xf32> to vector<64x32xf32>
    %101 = arith.addf %98, %100 : vector<64x32xf32>
    %102 = arith.addf %101, %96 : vector<64x32xf32>
    %cst_51 = arith.constant 0.000000e+00 : f32
    %103 = vector.broadcast %cst_51 : f32 to vector<64x32xf32>
    %104 = arith.maximumf %102, %103 : vector<64x32xf32>
    %105 = vector.shape_cast %104 : vector<64x32xf32> to vector<4x16x32xf32>
    %c0_52 = arith.constant 0 : index
    %c0_53 = arith.constant 0 : index
    %c0_54 = arith.constant 0 : index
    %c0_55 = arith.constant 0 : index
    %106 = vector.load %arg9[%c0_52, %c0_53, %c0_54, %c0_55] : memref<1x4x16x32xf32, #tpu.memory_space<vmem>>, vector<1x4x16x32xf32>
    %107 = vector.shape_cast %106 : vector<1x4x16x32xf32> to vector<4x16x32xf32>
    %108 = vector.shape_cast %105 : vector<4x16x32xf32> to vector<1x4x16x32xf32>
    tpu.vector_store %arg9[%c0_52, %c0_53, %c0_54, %c0_55], %108 {strides = array<i32>} : memref<1x4x16x32xf32, #tpu.memory_space<vmem>>, vector<1x4x16x32xf32>,
    return
  }
  func.func @transform_0(%arg0: i32, %arg1: i32) -> (i32, i32, i32, i32) {
    %c0_i32 = arith.constant 0 : i32
    %c0_i32_0 = arith.constant 0 : i32
    %c0_i32_1 = arith.constant 0 : i32
    %c0_i32_2 = arith.constant 0 : i32
    return %arg0, %c0_i32, %c0_i32_0, %c0_i32_1 : i32, i32, i32, i32
  }
  func.func @transform_1(%arg0: i32, %arg1: i32) -> (i32, i32) {
    %c0_i32 = arith.constant 0 : i32
    %c0_i32_0 = arith.constant 0 : i32
    %c0_i32_1 = arith.constant 0 : i32
    return %c0_i32, %c0_i32_0 : i32, i32
  }
  func.func @transform_2(%arg0: i32, %arg1: i32) -> (i32, i32) {
    %c0_i32 = arith.constant 0 : i32
    %c0_i32_0 = arith.constant 0 : i32
    %c0_i32_1 = arith.constant 0 : i32
    return %c0_i32, %c0_i32_0 : i32, i32
  }
  func.func @transform_3(%arg0: i32, %arg1: i32) -> (i32, i32, i32) {
    %c0_i32 = arith.constant 0 : i32
    %c0_i32_0 = arith.constant 0 : i32
    %c0_i32_1 = arith.constant 0 : i32
    %c0_i32_2 = arith.constant 0 : i32
    return %c0_i32, %c0_i32_0, %c0_i32_1 : i32, i32, i32
  }
  func.func @transform_4(%arg0: i32, %arg1: i32) -> (i32, i32) {
    %c0_i32 = arith.constant 0 : i32
    %c0_i32_0 = arith.constant 0 : i32
    %c0_i32_1 = arith.constant 0 : i32
    return %c0_i32, %c0_i32_0 : i32, i32
  }
  func.func @transform_5(%arg0: i32, %arg1: i32) -> (i32, i32) {
    %c0_i32 = arith.constant 0 : i32
    %c0_i32_0 = arith.constant 0 : i32
    %c0_i32_1 = arith.constant 0 : i32
    return %c0_i32, %c0_i32_0 : i32, i32
  }
  func.func @transform_6(%arg0: i32, %arg1: i32) -> (i32, i32) {
    %c0_i32 = arith.constant 0 : i32
    %c0_i32_0 = arith.constant 0 : i32
    %c0_i32_1 = arith.constant 0 : i32
    return %c0_i32, %c0_i32_0 : i32, i32
  }
  func.func @transform_7(%arg0: i32, %arg1: i32) -> (i32, i32, i32, i32) {
    %c0_i32 = arith.constant 0 : i32
    %c0_i32_0 = arith.constant 0 : i32
    %c0_i32_1 = arith.constant 0 : i32
    return %arg0, %arg1, %c0_i32, %c0_i32_0 : i32, i32, i32, i32
  }
}

</mosaic_0001>

<llo_original>
// kernel: bottleneck_forward.1
$region0: #{bottleneck_forward.1}
  #allocation0 [shape = 'u32[]', space=smem, size = 0x4, offset = 0x4, fixed_abs, tag = 'smem constant byte address 0x4 - core index']
  #allocation1 [shape = 'u32[144,128]{1,0:T(1,128)}', space=vmem, size = 0x12000, scoped, tag = 'internal scratch']
  #allocation2 [shape = 'f32[112,128]{1,0:T(8,128)}', space=vmem, size = 0xe000, scoped, tag = 'scratch operand']
  %s0 = inlined_call_operand.vmem [shape: f32[2,16,16,32], index: 0, kind: input, shape index: {}]
  %s1 = inlined_call_operand.vmem [shape: f32[32,128], index: 1, kind: input, shape index: {}]
  %s2 = inlined_call_operand.vmem [shape: f32[1,128], index: 2, kind: input, shape index: {}]
  %s3 = inlined_call_operand.vmem [shape: f32[3,384,128], index: 3, kind: input, shape index: {}]
  %s4 = inlined_call_operand.vmem [shape: f32[1,128], index: 4, kind: input, shape index: {}]
  %s5 = inlined_call_operand.vmem [shape: f32[128,32], index: 5, kind: input, shape index: {}]
  %s6 = inlined_call_operand.vmem [shape: f32[1,32], index: 6, kind: input, shape index: {}]
  %s7 = inlined_call_operand.hbm [shape: f32[2,16,16,32], index: 7, kind: output, shape index: {}]
  %s8 = sld [smem:[#allocation0]]
  $region69: #{bottleneck_forward.1} parent=0
    _
  %s10 = ssub.s32 1, %s8
  %s11 = scalar_select 0, %s10, %s8
  $region1: #{bottleneck_forward.1} parent=0
    #allocation3 [shape = 'u8[65536]{0}', space=vmem, size = 0x10000, scoped, tag = 'output window, operand 0']
    #allocation4 [shape = 's32[2]{0}', space=sflag, size = 0x8, scoped, tag = 'scoped memory for bottleneck_forward.1']
    %12 = vsyncpa [#allocation4], 0
    %s13 = scalar_lea.sflag [#allocation4], 1
    %14 = vsyncpa %s13, 0
    loop: start=0, step=1, limit=10
    $region2: #{bottleneck_forward.1} parent=1 // loop_pre_header
      _
    $region3: #{bottleneck_forward.1} parent=1 // loop_header
      %s16 = sphi 0, %s20
      %p17 = scmp.ge.s32.totalorder %s16, 10
      %s23 = sphi 0, %s35
      %s24 = sphi 0, %s31
      %s25 = sphi 0, %s23
      %s26 = sphi 0, %s24
      %s27 = sphi 0, %s25
      %s28 = sphi 0, %s26
      %s38 = sphi 0, %s40
      %s41 = sphi 0, %s38
      %s42 = sphi 0, %s41
      %s58 = sphi 0, %s42
      %s62 = sphi 0, %s62
      %s64 = sphi 0, %s62
      %s65 = sphi 0, %s64
      %s79 = sphi 0, %s65
      %s83 = sphi 0, %s83
      %s85 = sphi 0, %s83
      %s86 = sphi 0, %s85
      %s100 = sphi 0, %s86
      %s104 = sphi 0, %s104
      %s106 = sphi 0, %s104
      %s107 = sphi 0, %s106
      %s121 = sphi 0, %s107
      %s125 = sphi 0, %s125
      %s127 = sphi 0, %s125
      %s128 = sphi 0, %s127
      %s142 = sphi 0, %s128
      %s146 = sphi 0, %s146
      %s148 = sphi 0, %s146
      %s149 = sphi 0, %s148
      %s163 = sphi 0, %s149
      %s167 = sphi 0, %s167
      %s169 = sphi 0, %s167
      %s170 = sphi 0, %s169
      %s184 = sphi 0, %s170
      %s192 = sphi 0, %s194
      %s195 = sphi 0, %s192
      %s196 = sphi 0, %s195
      %s212 = sphi 0, %s196
    $region4: #{bottleneck_forward.1} parent=1 // loop_header_branch
      %19 = sbr.rel (%p17) target = $region8
    $region5: #{bottleneck_forward.1} parent=1 // loop_body
      %s21 = ssub.s32 %s16, 1
      %s22 = ssub.s32 %s16, 2
      %s29 = sadd.s32 1, %s24
      %p30 = scmp.ge.s32.totalorder %s29, 4
      %s31 = scalar_select %p30, 0, %s29
      %s32 = sadd.s32 1, %s23
      %s33 = scalar_select %p30, %s32, %s23
      %p34 = scmp.ge.s32.totalorder %s33, 2
      %s35 = scalar_select %p34, 0, %s33
      %s36 = ssub.s32 %s23, %s35
      %p37 = scmp.eq.s32.totalorder %s36, 0
      %s39 = sadd.s32 %s38, 1
      %s40 = scalar_select %p37, %s38, %s39
      %p43 = pneg %p37
      %p44 = scmp.eq.s32.totalorder %s16, 7
      %p45 = por %p43, %p44
      %p46 = scmp.ne.s32.totalorder %s38, %s41
      %p47 = scmp.eq.s32.totalorder %s16, 0
      %p48 = por %p46, %p47
      %p49 = scmp.ne.s32.totalorder %s38, %s41
      %p50 = scmp.eq.s32.totalorder %s21, 7
      %p51 = por %p49, %p50
      %p52 = scmp.ne.s32.totalorder %s41, %s42
      %p53 = scmp.eq.s32.totalorder %s21, 0
      %p54 = por %p52, %p53
      %p55 = scmp.ne.s32.totalorder %s41, %s42
      %p56 = scmp.eq.s32.totalorder %s22, 7
      %p57 = por %p55, %p56
      %p59 = scmp.ne.s32.totalorder %s42, %s58
      %p60 = scmp.eq.s32.totalorder %s22, 0
      %p61 = por %p59, %p60
      %s63 = sadd.s32 %s62, 1
      %p66 = scmp.eq.s32.totalorder %s16, 7
      %p67 = scmp.ne.s32.totalorder %s62, %s64
      %p68 = scmp.eq.s32.totalorder %s16, 0
      %p69 = por %p67, %p68
      %p70 = scmp.ne.s32.totalorder %s62, %s64
      %p71 = scmp.eq.s32.totalorder %s21, 7
      %p72 = por %p70, %p71
      %p73 = scmp.ne.s32.totalorder %s64, %s65
      %p74 = scmp.eq.s32.totalorder %s21, 0
      %p75 = por %p73, %p74
      %p76 = scmp.ne.s32.totalorder %s64, %s65
      %p77 = scmp.eq.s32.totalorder %s22, 7
      %p78 = por %p76, %p77
      %p80 = scmp.ne.s32.totalorder %s65, %s79
      %p81 = scmp.eq.s32.totalorder %s22, 0
      %p82 = por %p80, %p81
      %s84 = sadd.s32 %s83, 1
      %p87 = scmp.eq.s32.totalorder %s16, 7
      %p88 = scmp.ne.s32.totalorder %s83, %s85
      %p89 = scmp.eq.s32.totalorder %s16, 0
      %p90 = por %p88, %p89
      %p91 = scmp.ne.s32.totalorder %s83, %s85
      %p92 = scmp.eq.s32.totalorder %s21, 7
      %p93 = por %p91, %p92
      %p94 = scmp.ne.s32.totalorder %s85, %s86
      %p95 = scmp.eq.s32.totalorder %s21, 0
      %p96 = por %p94, %p95
      %p97 = scmp.ne.s32.totalorder %s85, %s86
      %p98 = scmp.eq.s32.totalorder %s22, 7
      %p99 = por %p97, %p98
      %p101 = scmp.ne.s32.totalorder %s86, %s100
      %p102 = scmp.eq.s32.totalorder %s22, 0
      %p103 = por %p101, %p102
      %s105 = sadd.s32 %s104, 1
      %p108 = scmp.eq.s32.totalorder %s16, 7
      %p109 = scmp.ne.s32.totalorder %s104, %s106
      %p110 = scmp.eq.s32.totalorder %s16, 0
      %p111 = por %p109, %p110
      %p112 = scmp.ne.s32.totalorder %s104, %s106
      %p113 = scmp.eq.s32.totalorder %s21, 7
      %p114 = por %p112, %p113
      %p115 = scmp.ne.s32.totalorder %s106, %s107
      %p116 = scmp.eq.s32.totalorder %s21, 0
      %p117 = por %p115, %p116
      %p118 = scmp.ne.s32.totalorder %s106, %s107
      %p119 = scmp.eq.s32.totalorder %s22, 7
      %p120 = por %p118, %p119
      %p122 = scmp.ne.s32.totalorder %s107, %s121
      %p123 = scmp.eq.s32.totalorder %s22, 0
      %p124 = por %p122, %p123
      %s126 = sadd.s32 %s125, 1
      %p129 = scmp.eq.s32.totalorder %s16, 7
      %p130 = scmp.ne.s32.totalorder %s125, %s127
      %p131 = scmp.eq.s32.totalorder %s16, 0
      %p132 = por %p130, %p131
      %p133 = scmp.ne.s32.totalorder %s125, %s127
      %p134 = scmp.eq.s32.totalorder %s21, 7
      %p135 = por %p133, %p134
      %p136 = scmp.ne.s32.totalorder %s127, %s128
      %p137 = scmp.eq.s32.totalorder %s21, 0
      %p138 = por %p136, %p137
      %p139 = scmp.ne.s32.totalorder %s127, %s128
      %p140 = scmp.eq.s32.totalorder %s22, 7
      %p141 = por %p139, %p140
      %p143 = scmp.ne.s32.totalorder %s128, %s142
      %p144 = scmp.eq.s32.totalorder %s22, 0
      %p145 = por %p143, %p144
      %s147 = sadd.s32 %s146, 1
      %p150 = scmp.eq.s32.totalorder %s16, 7
      %p151 = scmp.ne.s32.totalorder %s146, %s148
      %p152 = scmp.eq.s32.totalorder %s16, 0
      %p153 = por %p151, %p152
      %p154 = scmp.ne.s32.totalorder %s146, %s148
      %p155 = scmp.eq.s32.totalorder %s21, 7
      %p156 = por %p154, %p155
      %p157 = scmp.ne.s32.totalorder %s148, %s149
      %p158 = scmp.eq.s32.totalorder %s21, 0
      %p159 = por %p157, %p158
      %p160 = scmp.ne.s32.totalorder %s148, %s149
      %p161 = scmp.eq.s32.totalorder %s22, 7
      %p162 = por %p160, %p161
      %p164 = scmp.ne.s32.totalorder %s149, %s163
      %p165 = scmp.eq.s32.totalorder %s22, 0
      %p166 = por %p164, %p165
      %s168 = sadd.s32 %s167, 1
      %p171 = scmp.eq.s32.totalorder %s16, 7
      %p172 = scmp.ne.s32.totalorder %s167, %s169
      %p173 = scmp.eq.s32.totalorder %s16, 0
      %p174 = por %p172, %p173
      %p175 = scmp.ne.s32.totalorder %s167, %s169
      %p176 = scmp.eq.s32.totalorder %s21, 7
      %p177 = por %p175, %p176
      %p178 = scmp.ne.s32.totalorder %s169, %s170
      %p179 = scmp.eq.s32.totalorder %s21, 0
      %p180 = por %p178, %p179
      %p181 = scmp.ne.s32.totalorder %s169, %s170
      %p182 = scmp.eq.s32.totalorder %s22, 7
      %p183 = por %p181, %p182
      %p185 = scmp.ne.s32.totalorder %s170, %s184
      %p186 = scmp.eq.s32.totalorder %s22, 0
      %p187 = por %p185, %p186
      %s188 = ssub.s32 %s23, %s35
      %s189 = ssub.s32 %s24, %s31
      %s190 = sor.u32 %s188, %s189
      %p191 = scmp.eq.s32.totalorder %s190, 0
      %s193 = sadd.s32 %s192, 1
      %s194 = scalar_select %p191, %s192, %s193
      %p197 = pneg %p191
      %p198 = scmp.eq.s32.totalorder %s16, 7
      %p199 = por %p197, %p198
      %p200 = scmp.ne.s32.totalorder %s192, %s195
      %p201 = scmp.eq.s32.totalorder %s16, 0
      %p202 = por %p200, %p201
      %p203 = scmp.ne.s32.totalorder %s192, %s195
      %p204 = scmp.eq.s32.totalorder %s21, 7
      %p205 = por %p203, %p204
      %p206 = scmp.ne.s32.totalorder %s195, %s196
      %p207 = scmp.eq.s32.totalorder %s21, 0
      %p208 = por %p206, %p207
      %p209 = scmp.ne.s32.totalorder %s195, %s196
      %p210 = scmp.eq.s32.totalorder %s22, 7
      %p211 = por %p209, %p210
      %p213 = scmp.ne.s32.totalorder %s196, %s212
      %p214 = scmp.eq.s32.totalorder %s22, 0
      %p215 = por %p213, %p214
      %p216 = scmp.le.s32.totalorder 1, %s16
      %p217 = scmp.lt.s32.totalorder %s16, 9
      %p218 = pnand %p216, %p217
      %p219 = pneg %p218
      // Predicated region
      $region9: #{bottleneck_forward.1} parent=5 // pred_check
        _
      $region10: #{bottleneck_forward.1} parent=5 // pred_check_branch
        %221 = sbr.rel (%p218) target = $region12
      $region11: #{bottleneck_forward.1} parent=5 // pred_region
        %s222 = ssub.s32 %s16, 1
        // Predicated region
        $region13: #{bottleneck_forward.1} parent=11 // pred_check
          %p223 = pneg %p75
        $region14: #{bottleneck_forward.1} parent=11 // pred_check_branch
          %225 = sbr.rel (%p223) target = $region16
        $region15: #{bottleneck_forward.1} parent=11 // pred_region
          _
        $region16: #{bottleneck_forward.1} parent=11 // pred_fallthru
          _
        // Predicated region
        $region17: #{bottleneck_forward.1} parent=11 // pred_check
          %p226 = pneg %p96
        $region18: #{bottleneck_forward.1} parent=11 // pred_check_branch
          %228 = sbr.rel (%p226) target = $region20
        $region19: #{bottleneck_forward.1} parent=11 // pred_region
          _
        $region20: #{bottleneck_forward.1} parent=11 // pred_fallthru
          _
        // Predicated region
        $region21: #{bottleneck_forward.1} parent=11 // pred_check
          %p229 = pneg %p117
        $region22: #{bottleneck_forward.1} parent=11 // pred_check_branch
          %231 = sbr.rel (%p229) target = $region24
        $region23: #{bottleneck_forward.1} parent=11 // pred_region
          _
        $region24: #{bottleneck_forward.1} parent=11 // pred_fallthru
          _
        // Predicated region
        $region25: #{bottleneck_forward.1} parent=11 // pred_check
          %p232 = pneg %p138
        $region26: #{bottleneck_forward.1} parent=11 // pred_check_branch
          %234 = sbr.rel (%p232) target = $region28
        $region27: #{bottleneck_forward.1} parent=11 // pred_region
          _
        $region28: #{bottleneck_forward.1} parent=11 // pred_fallthru
          _
        // Predicated region
        $region29: #{bottleneck_forward.1} parent=11 // pred_check
          %p235 = pneg %p159
        $region30: #{bottleneck_forward.1} parent=11 // pred_check_branch
          %237 = sbr.rel (%p235) target = $region32
        $region31: #{bottleneck_forward.1} parent=11 // pred_region
          _
        $region32: #{bottleneck_forward.1} parent=11 // pred_fallthru
          _
        // Predicated region
        $region33: #{bottleneck_forward.1} parent=11 // pred_check
          %p238 = pneg %p180
        $region34: #{bottleneck_forward.1} parent=11 // pred_check_branch
          %240 = sbr.rel (%p238) target = $region36
        $region35: #{bottleneck_forward.1} parent=11 // pred_region
          _
        $region36: #{bottleneck_forward.1} parent=11 // pred_fallthru
          _
      $region12: #{bottleneck_forward.1} parent=5 // pred_fallthru
        _
      %p241 = scmp.lt.s32.totalorder %s16, 8
      // Predicated region
      $region37: #{bottleneck_forward.1} parent=5 // pred_check
        %p242 = pneg %p241
      $region38: #{bottleneck_forward.1} parent=5 // pred_check_branch
        %244 = sbr.rel (%p242) target = $region40
      $region39: #{bottleneck_forward.1} parent=5 // pred_region
        // Predicated region
        $region41: #{bottleneck_forward.1} parent=39 // pred_check
          %p245 = pneg %p48
        $region42: #{bottleneck_forward.1} parent=39 // pred_check_branch
          %247 = sbr.rel (%p245) target = $region44
        $region43: #{bottleneck_forward.1} parent=39 // pred_region
          %p248 = scmp.lt.s32.totalorder %s23, 1
          %s249 = scalar_select %p248, %s23, 1
          %s250 = smul.addr %s249, 32
          %s251 = smul.addr %s250, 8
          %s252 = scalar_lea.vmem %s0, %s251
        $region44: #{bottleneck_forward.1} parent=39 // pred_fallthru
          _
      $region40: #{bottleneck_forward.1} parent=5 // pred_fallthru
        _
      %p253 = scmp.le.s32.totalorder 1, %s16
      %p254 = scmp.lt.s32.totalorder %s16, 9
      %p255 = pnand %p253, %p254
      %p256 = pneg %p255
      // Predicated region
      $region45: #{bottleneck_forward.1} parent=5 // pred_check
        _
      $region46: #{bottleneck_forward.1} parent=5 // pred_check_branch
        %258 = sbr.rel (%p255) target = $region48
      $region47: #{bottleneck_forward.1} parent=5 // pred_region
        %s259 = ssub.s32 %s16, 1
        %p260 = scmp.lt.s32.totalorder %s25, 1
        %s261 = scalar_select %p260, %s25, 1
        %s262 = smul.addr %s261, 32
        %s263 = smul.addr %s262, 8
        %s264 = scalar_lea.vmem %s0, %s263
        %p265 = pneg %p54
        %p266 = pneg %p51
        %p267 = pneg %p75
        %p268 = pneg %p72
        %p269 = pneg %p96
        %p270 = pneg %p93
        %p271 = pneg %p117
        %p272 = pneg %p114
        %p273 = pneg %p138
        %p274 = pneg %p135
        %p275 = pneg %p159
        %p276 = pneg %p156
        %p277 = pneg %p180
        %p278 = pneg %p177
        %p279 = pneg %p208
        %p280 = pneg %p205
        %s281 = sand.u32 %s195, 1
        %s282 = scalar_lea.sflag [#allocation4], %s281
        %s283 = sand.u32 %s195, 1
        %s284 = smul.addr %s283, 64
        %s285 = scalar_lea.vmem [#allocation3], %s284
        %p286 = scmp.lt.s32.totalorder %s25, 1
        %s287 = scalar_select %p286, %s25, 1
        %s288 = smul.addr %s287, 32
        %s289 = smul.addr %s288, 8
        %s290 = scalar_lea.vmem %s0, %s289
        %s291 = smul.u32 4, %s26
        %s292 = smul.u32 %s26, 4
        %293 = vst [vmem:[#allocation2] sm:$0xff] 0.0
        %294 = vst [vmem:[#allocation2 + $0x8] sm:$0xff] 0.0
        %295 = vst [vmem:[#allocation2 + $0x10] sm:$0xff] 0.0
        %296 = vst [vmem:[#allocation2 + $0x58] sm:$0xff] 0.0
        %297 = vst [vmem:[#allocation2 + $0x60] sm:$0xff] 0.0
        %298 = vst [vmem:[#allocation2 + $0x68] sm:$0xff] 0.0
        %s299 = smul.u32 %s292, 16
        %s300 = scalar_lea.vmem %s290, %s299
        %v301 = vld [vmem:[%s300] sm:$0xff]
        %v302 = vld [vmem:[%s300 + $0x8] sm:$0xff]
        %v303 = vld [vmem:[%s300 + $0x10] sm:$0xff]
        %v304 = vld [vmem:[%s300 + $0x18] sm:$0xff]
        %v305 = vld [vmem:[%s300 + $0x20] sm:$0xff]
        %v306 = vld [vmem:[%s300 + $0x28] sm:$0xff]
        %v307 = vld [vmem:[%s300 + $0x30] sm:$0xff]
        %v308 = vld [vmem:[%s300 + $0x38] sm:$0xff]
        %v309 = vld [vmem:[%s1] sm:$0xff]
        %v310 = vld [vmem:[%s1 + $0x8] sm:$0xff]
        %v311 = vld [vmem:[%s1 + $0x10] sm:$0xff]
        %v312 = vld [vmem:[%s1 + $0x18] sm:$0xff]
        %v313 = vld [vmem:[%s2] sm:$0x1]
        %v315 = vlaneseq
        %v316 = vshrl.u32 %v315, 7
        %v317 = vsub.s32 0, %v316
        %v318 = vrot.slane %v313, %v317
        %vm320 = vcmask 261120
        %v322 = vsel %vm320, %v301, 0
        %v325 = vsel %vm320, %v302, 0
        %v328 = vsel %vm320, %v303, 0
        %v331 = vsel %vm320, %v304, 0
        %v334 = vsel %vm320, %v305, 0
        %v337 = vsel %vm320, %v306, 0
        %v340 = vsel %vm320, %v307, 0
        %v343 = vsel %vm320, %v308, 0
        %345 = vmatprep.subr.mxu0 0.0
        %346 = vmatpush1.msra.mxu0 %v309
        %347 = vmatprep.subr.mxu0 0.0
        %348 = vmatpush1.msra.mxu0 %v310
        %349 = vmatprep.subr.mxu0 0.0
        %350 = vmatpush1.msra.mxu0 %v311
        %351 = vmatprep.subr.mxu0 0.0
        %352 = vmatpush1.msra.mxu0 %v312
        %353 = vmatprep.subr.mxu0 0.0
        %354 = vmatpush1.msra.mxu0 0.0
        %355 = vmatprep.subr.mxu0 0.0
        %356 = vmatpush1.msra.mxu0 0.0
        %357 = vmatprep.subr.mxu0 0.0
        %358 = vmatpush1.msra.mxu0 0.0
        %359 = vmatprep.subr.mxu0 0.0
        %360 = vmatpush1.msra.mxu0 0.0
        %361 = vmatprep.subr.mxu0 0.0
        %362 = vmatpush1.msra.mxu0 0.0
        %363 = vmatprep.subr.mxu0 0.0
        %364 = vmatpush1.msra.mxu0 0.0
        %365 = vmatprep.subr.mxu0 0.0
        %366 = vmatpush1.msra.mxu0 0.0
        %367 = vmatprep.subr.mxu0 0.0
        %368 = vmatpush1.msra.mxu0 0.0
        %369 = vmatprep.subr.mxu0 0.0
        %370 = vmatpush1.msra.mxu0 0.0
        %371 = vmatprep.subr.mxu0 0.0
        %372 = vmatpush1.msra.mxu0 0.0
        %373 = vmatprep.subr.mxu0 0.0
        %374 = vmatpush1.msra.mxu0 0.0
        %375 = vmatprep.subr.mxu0 0.0
        %376 = vmatpush1.msra.mxu0 0.0
        %377 = vmatprep.subr.mxu0 0.0
        %378 = vmatpush1.msra.mxu0 0.0
        %379 = vmatprep.subr.mxu0 0.0
        %380 = vmatpush1.msra.mxu0 0.0
        %381 = vmatprep.subr.mxu0 0.0
        %382 = vmatpush1.msra.mxu0 0.0
        %383 = vmatprep.subr.mxu0 0.0
        %384 = vmatpush1.msra.mxu0 0.0
        %385 = vmatprep.subr.mxu0 0.0
        %386 = vmatpush1.msra.mxu0 0.0
        %387 = vmatprep.subr.mxu0 0.0
        %388 = vmatpush1.msra.mxu0 0.0
        %389 = vmatprep.subr.mxu0 0.0
        %390 = vmatpush1.msra.mxu0 0.0
        %391 = vmatprep.subr.mxu0 0.0
        %392 = vmatpush1.msra.mxu0 0.0
        %393 = vmatprep.subr.mxu0 0.0
        %394 = vmatpush1.msra.mxu0 0.0
        %395 = vmatprep.subr.mxu0 0.0
        %396 = vmatpush1.msra.mxu0 0.0
        %397 = vmatprep.subr.mxu0 0.0
        %398 = vmatpush1.msra.mxu0 0.0
        %399 = vmatprep.subr.mxu0 0.0
        %400 = vmatpush1.msra.mxu0 0.0
        %401 = vmatprep.subr.mxu0 0.0
        %402 = vmatpush1.msra.mxu0 0.0
        %403 = vmatprep.subr.mxu0 0.0
        %404 = vmatpush1.msra.mxu0 0.0
        %405 = vmatprep.subr.mxu0 0.0
        %406 = vmatpush1.msra.mxu0 0.0
        %407 = vmatprep.subr.mxu0 0.0
        %408 = vmatpush1.msra.mxu0 0.0
        %409 = vmatprep.mubr.f32.mxu0 0.0
        %410 = vmatmul.mubr.f32.gmra.mrb[0].mxu0 %v322
        %v411 = vpop.f32.mrb[0].mxu0
        %v412 = vadd.f32 %v318, %v411
        %v413 = vpop.f32.mrb[0].mxu0
        %414 = vmatprep.mubr.f32.mxu0 0.0
        %415 = vmatmul.mubr.f32.gmra.mrb[0].mxu0 %v325
        %v416 = vpop.f32.mrb[0].mxu0
        %v417 = vadd.f32 %v318, %v416
        %v418 = vpop.f32.mrb[0].mxu0
        %419 = vmatprep.mubr.f32.mxu0 0.0
        %420 = vmatmul.mubr.f32.gmra.mrb[0].mxu0 %v328
        %v421 = vpop.f32.mrb[0].mxu0
        %v422 = vadd.f32 %v318, %v421
        %v423 = vpop.f32.mrb[0].mxu0
        %424 = vmatprep.mubr.f32.mxu0 0.0
        %425 = vmatmul.mubr.f32.gmra.mrb[0].mxu0 %v331
        %v426 = vpop.f32.mrb[0].mxu0
        %v427 = vadd.f32 %v318, %v426
        %v428 = vpop.f32.mrb[0].mxu0
        %429 = vmatprep.mubr.f32.mxu0 0.0
        %430 = vmatmul.mubr.f32.gmra.mrb[0].mxu0 %v334
        %v431 = vpop.f32.mrb[0].mxu0
        %v432 = vadd.f32 %v318, %v431
        %v433 = vpop.f32.mrb[0].mxu0
        %434 = vmatprep.mubr.f32.mxu0 0.0
        %435 = vmatmul.mubr.f32.gmra.mrb[0].mxu0 %v337
        %v436 = vpop.f32.mrb[0].mxu0
        %v437 = vadd.f32 %v318, %v436
        %v438 = vpop.f32.mrb[0].mxu0
        %439 = vmatprep.mubr.f32.mxu0 0.0
        %440 = vmatmul.mubr.f32.gmra.mrb[0].mxu0 %v340
        %v441 = vpop.f32.mrb[0].mxu0
        %v442 = vadd.f32 %v318, %v441
        %v443 = vpop.f32.mrb[0].mxu0
        %444 = vmatprep.mubr.f32.mxu0 0.0
        %445 = vmatmul.mubr.f32.gmra.mrb[0].mxu0 %v343
        %v446 = vpop.f32.mrb[0].mxu0
        %v447 = vadd.f32 %v318, %v446
        %v448 = vpop.f32.mrb[0].mxu0
        %449 = vdwg.mxu0
        %v450 = vmax.f32 %v412, 0.0
        %v451 = vmax.f32 %v417, 0.0
        %v452 = vmax.f32 %v422, 0.0
        %v453 = vmax.f32 %v427, 0.0
        %v454 = vmax.f32 %v432, 0.0
        %v455 = vmax.f32 %v437, 0.0
        %v456 = vmax.f32 %v442, 0.0
        %v457 = vmax.f32 %v447, 0.0
        %458 = vst [vmem:[#allocation2 + $0x18] sm:$0xff] %v450
        %459 = vst [vmem:[#allocation2 + $0x20] sm:$0xff] %v451
        %460 = vst [vmem:[#allocation2 + $0x28] sm:$0xff] %v452
        %461 = vst [vmem:[#allocation2 + $0x30] sm:$0xff] %v453
        %462 = vst [vmem:[#allocation2 + $0x38] sm:$0xff] %v454
        %463 = vst [vmem:[#allocation2 + $0x40] sm:$0xff] %v455
        %464 = vst [vmem:[#allocation2 + $0x48] sm:$0xff] %v456
        %465 = vst [vmem:[#allocation2 + $0x50] sm:$0xff] %v457
        %p466 = scmp.gt.s32.totalorder %s26, 0
        // Predicated region
        $region49: #{bottleneck_forward.1} parent=47 // pred_check
          %p467 = pneg %p466
        $region50: #{bottleneck_forward.1} parent=47 // pred_check_branch
          %469 = sbr.rel (%p467) target = $region52
        $region51: #{bottleneck_forward.1} parent=47 // pred_region
          %s470 = ssub.s32 %s292, 1
          %s471 = smul.u32 %s470, 16
          %s472 = scalar_lea.vmem %s290, %s471
          %v473 = vld [vmem:[%s472] sm:$0xff]
          %v474 = vld [vmem:[%s472 + $0x8] sm:$0xff]
          %v475 = vld [vmem:[%s1] sm:$0xff]
          %v476 = vld [vmem:[%s1 + $0x8] sm:$0xff]
          %v477 = vld [vmem:[%s1 + $0x10] sm:$0xff]
          %v478 = vld [vmem:[%s1 + $0x18] sm:$0xff]
          %v479 = vld [vmem:[%s2] sm:$0x1]
          %v481 = vlaneseq
          %v482 = vshrl.u32 %v481, 7
          %v483 = vsub.s32 0, %v482
          %v484 = vrot.slane %v479, %v483
          %v487 = vsel %vm320, %v473, 0
          %v490 = vsel %vm320, %v474, 0
          %492 = vmatprep.subr.mxu0 0.0
          %493 = vmatpush1.msra.mxu0 %v475
          %494 = vmatprep.subr.mxu0 0.0
          %495 = vmatpush1.msra.mxu0 %v476
          %496 = vmatprep.subr.mxu0 0.0
          %497 = vmatpush1.msra.mxu0 %v477
          %498 = vmatprep.subr.mxu0 0.0
          %499 = vmatpush1.msra.mxu0 %v478
          %500 = vmatprep.subr.mxu0 0.0
          %501 = vmatpush1.msra.mxu0 0.0
          %502 = vmatprep.subr.mxu0 0.0
          %503 = vmatpush1.msra.mxu0 0.0
          %504 = vmatprep.subr.mxu0 0.0
          %505 = vmatpush1.msra.mxu0 0.0
          %506 = vmatprep.subr.mxu0 0.0
          %507 = vmatpush1.msra.mxu0 0.0
          %508 = vmatprep.subr.mxu0 0.0
          %509 = vmatpush1.msra.mxu0 0.0
          %510 = vmatprep.subr.mxu0 0.0
          %511 = vmatpush1.msra.mxu0 0.0
          %512 = vmatprep.subr.mxu0 0.0
          %513 = vmatpush1.msra.mxu0 0.0
          %514 = vmatprep.subr.mxu0 0.0
          %515 = vmatpush1.msra.mxu0 0.0
          %516 = vmatprep.subr.mxu0 0.0
          %517 = vmatpush1.msra.mxu0 0.0
          %518 = vmatprep.subr.mxu0 0.0
          %519 = vmatpush1.msra.mxu0 0.0
          %520 = vmatprep.subr.mxu0 0.0
          %521 = vmatpush1.msra.mxu0 0.0
          %522 = vmatprep.subr.mxu0 0.0
          %523 = vmatpush1.msra.mxu0 0.0
          %524 = vmatprep.subr.mxu0 0.0
          %525 = vmatpush1.msra.mxu0 0.0
          %526 = vmatprep.subr.mxu0 0.0
          %527 = vmatpush1.msra.mxu0 0.0
          %528 = vmatprep.subr.mxu0 0.0
          %529 = vmatpush1.msra.mxu0 0.0
          %530 = vmatprep.subr.mxu0 0.0
          %531 = vmatpush1.msra.mxu0 0.0
          %532 = vmatprep.subr.mxu0 0.0
          %533 = vmatpush1.msra.mxu0 0.0
          %534 = vmatprep.subr.mxu0 0.0
          %535 = vmatpush1.msra.mxu0 0.0
          %536 = vmatprep.subr.mxu0 0.0
          %537 = vmatpush1.msra.mxu0 0.0
          %538 = vmatprep.subr.mxu0 0.0
          %539 = vmatpush1.msra.mxu0 0.0
          %540 = vmatprep.subr.mxu0 0.0
          %541 = vmatpush1.msra.mxu0 0.0
          %542 = vmatprep.subr.mxu0 0.0
          %543 = vmatpush1.msra.mxu0 0.0
          %544 = vmatprep.subr.mxu0 0.0
          %545 = vmatpush1.msra.mxu0 0.0
          %546 = vmatprep.subr.mxu0 0.0
          %547 = vmatpush1.msra.mxu0 0.0
          %548 = vmatprep.subr.mxu0 0.0
          %549 = vmatpush1.msra.mxu0 0.0
          %550 = vmatprep.subr.mxu0 0.0
          %551 = vmatpush1.msra.mxu0 0.0
          %552 = vmatprep.subr.mxu0 0.0
          %553 = vmatpush1.msra.mxu0 0.0
          %554 = vmatprep.subr.mxu0 0.0
          %555 = vmatpush1.msra.mxu0 0.0
          %556 = vmatprep.mubr.f32.mxu0 0.0
          %557 = vmatmul.mubr.f32.gmra.mrb[0].mxu0 %v487
          %v558 = vpop.f32.mrb[0].mxu0
          %v559 = vadd.f32 %v484, %v558
          %v560 = vpop.f32.mrb[0].mxu0
          %561 = vmatprep.mubr.f32.mxu0 0.0
          %562 = vmatmul.mubr.f32.gmra.mrb[0].mxu0 %v490
          %v563 = vpop.f32.mrb[0].mxu0
          %v564 = vadd.f32 %v484, %v563
          %v565 = vpop.f32.mrb[0].mxu0
          %566 = vdwg.mxu0
          %v567 = vmax.f32 %v559, 0.0
          %v568 = vmax.f32 %v564, 0.0
          %569 = vst [vmem:[#allocation2 + $0x8] sm:$0xff] %v567
          %570 = vst [vmem:[#allocation2 + $0x10] sm:$0xff] %v568
        $region52: #{bottleneck_forward.1} parent=47 // pred_fallthru
          _
        %p571 = scmp.lt.s32.totalorder %s26, 3
        // Predicated region
        $region53: #{bottleneck_forward.1} parent=47 // pred_check
          %p572 = pneg %p571
        $region54: #{bottleneck_forward.1} parent=47 // pred_check_branch
          %574 = sbr.rel (%p572) target = $region56
        $region55: #{bottleneck_forward.1} parent=47 // pred_region
          %s575 = sadd.s32 %s292, 4
          %s576 = smul.u32 %s575, 16
          %s577 = scalar_lea.vmem %s290, %s576
          %v578 = vld [vmem:[%s577] sm:$0xff]
          %v579 = vld [vmem:[%s577 + $0x8] sm:$0xff]
          %v580 = vld [vmem:[%s1] sm:$0xff]
          %v581 = vld [vmem:[%s1 + $0x8] sm:$0xff]
          %v582 = vld [vmem:[%s1 + $0x10] sm:$0xff]
          %v583 = vld [vmem:[%s1 + $0x18] sm:$0xff]
          %v584 = vld [vmem:[%s2] sm:$0x1]
          %v586 = vlaneseq
          %v587 = vshrl.u32 %v586, 7
          %v588 = vsub.s32 0, %v587
          %v589 = vrot.slane %v584, %v588
          %v592 = vsel %vm320, %v578, 0
          %v595 = vsel %vm320, %v579, 0
          %597 = vmatprep.subr.mxu0 0.0
          %598 = vmatpush1.msra.mxu0 %v580
          %599 = vmatprep.subr.mxu0 0.0
          %600 = vmatpush1.msra.mxu0 %v581
          %601 = vmatprep.subr.mxu0 0.0
          %602 = vmatpush1.msra.mxu0 %v582
          %603 = vmatprep.subr.mxu0 0.0
          %604 = vmatpush1.msra.mxu0 %v583
          %605 = vmatprep.subr.mxu0 0.0
          %606 = vmatpush1.msra.mxu0 0.0
          %607 = vmatprep.subr.mxu0 0.0
          %608 = vmatpush1.msra.mxu0 0.0
          %609 = vmatprep.subr.mxu0 0.0
          %610 = vmatpush1.msra.mxu0 0.0
          %611 = vmatprep.subr.mxu0 0.0
          %612 = vmatpush1.msra.mxu0 0.0
          %613 = vmatprep.subr.mxu0 0.0
          %614 = vmatpush1.msra.mxu0 0.0
          %615 = vmatprep.subr.mxu0 0.0
          %616 = vmatpush1.msra.mxu0 0.0
          %617 = vmatprep.subr.mxu0 0.0
          %618 = vmatpush1.msra.mxu0 0.0
          %619 = vmatprep.subr.mxu0 0.0
          %620 = vmatpush1.msra.mxu0 0.0
          %621 = vmatprep.subr.mxu0 0.0
          %622 = vmatpush1.msra.mxu0 0.0
          %623 = vmatprep.subr.mxu0 0.0
          %624 = vmatpush1.msra.mxu0 0.0
          %625 = vmatprep.subr.mxu0 0.0
          %626 = vmatpush1.msra.mxu0 0.0
          %627 = vmatprep.subr.mxu0 0.0
          %628 = vmatpush1.msra.mxu0 0.0
          %629 = vmatprep.subr.mxu0 0.0
          %630 = vmatpush1.msra.mxu0 0.0
          %631 = vmatprep.subr.mxu0 0.0
          %632 = vmatpush1.msra.mxu0 0.0
          %633 = vmatprep.subr.mxu0 0.0
          %634 = vmatpush1.msra.mxu0 0.0
          %635 = vmatprep.subr.mxu0 0.0
          %636 = vmatpush1.msra.mxu0 0.0
          %637 = vmatprep.subr.mxu0 0.0
          %638 = vmatpush1.msra.mxu0 0.0
          %639 = vmatprep.subr.mxu0 0.0
          %640 = vmatpush1.msra.mxu0 0.0
          %641 = vmatprep.subr.mxu0 0.0
          %642 = vmatpush1.msra.mxu0 0.0
          %643 = vmatprep.subr.mxu0 0.0
          %644 = vmatpush1.msra.mxu0 0.0
          %645 = vmatprep.subr.mxu0 0.0
          %646 = vmatpush1.msra.mxu0 0.0
          %647 = vmatprep.subr.mxu0 0.0
          %648 = vmatpush1.msra.mxu0 0.0
          %649 = vmatprep.subr.mxu0 0.0
          %650 = vmatpush1.msra.mxu0 0.0
          %651 = vmatprep.subr.mxu0 0.0
          %652 = vmatpush1.msra.mxu0 0.0
          %653 = vmatprep.subr.mxu0 0.0
          %654 = vmatpush1.msra.mxu0 0.0
          %655 = vmatprep.subr.mxu0 0.0
          %656 = vmatpush1.msra.mxu0 0.0
          %657 = vmatprep.subr.mxu0 0.0
          %658 = vmatpush1.msra.mxu0 0.0
          %659 = vmatprep.subr.mxu0 0.0
          %660 = vmatpush1.msra.mxu0 0.0
          %661 = vmatprep.mubr.f32.mxu0 0.0
          %662 = vmatmul.mubr.f32.gmra.mrb[0].mxu0 %v592
          %v663 = vpop.f32.mrb[0].mxu0
          %v664 = vadd.f32 %v589, %v663
          %v665 = vpop.f32.mrb[0].mxu0
          %666 = vmatprep.mubr.f32.mxu0 0.0
          %667 = vmatmul.mubr.f32.gmra.mrb[0].mxu0 %v595
          %v668 = vpop.f32.mrb[0].mxu0
          %v669 = vadd.f32 %v589, %v668
          %v670 = vpop.f32.mrb[0].mxu0
          %671 = vdwg.mxu0
          %v672 = vmax.f32 %v664, 0.0
          %v673 = vmax.f32 %v669, 0.0
          %674 = vst [vmem:[#allocation2 + $0x58] sm:$0xff] %v672
          %675 = vst [vmem:[#allocation2 + $0x60] sm:$0xff] %v673
        $region56: #{bottleneck_forward.1} parent=47 // pred_fallthru
          _
        %v676 = vlaneseq
        %v677 = vshrl.u32 %v676, 7
        %v678 = vadd.s32 %v677, 8
        %v679 = vadd.s32 %v677, 16
        %v680 = vadd.s32 %v677, 24
        %v681 = vadd.s32 %v677, 32
        %v682 = vadd.s32 %v677, 40
        %v683 = vadd.s32 %v677, 48
        %v684 = vadd.s32 %v677, 56
        %v685 = vadd.s32 %v677, 64
        %v686 = vadd.s32 %v677, 72
        %v687 = vadd.s32 %v677, 80
        %v688 = vadd.s32 %v677, 88
        %vm689 = vcmp.lt.s32.totalorder %v677, 0
        %v690 = vsub.s32 0, %v677
        %v691 = vsel %vm689, %v690, %v677
        %v692 = vshrl.u32 %v691, 4
        %v693 = vand.u32 %v691, 15
        %v694 = vsub.s32 0, %v693
        %v695 = vsel %vm689, %v694, %v693
        %vm696 = vcmp.lt.s32.totalorder %v678, 0
        %v697 = vsub.s32 0, %v678
        %v698 = vsel %vm696, %v697, %v678
        %v699 = vshrl.u32 %v698, 4
        %v700 = vand.u32 %v698, 15
        %v701 = vsub.s32 0, %v700
        %v702 = vsel %vm696, %v701, %v700
        %vm703 = vcmp.lt.s32.totalorder %v679, 0
        %v704 = vsub.s32 0, %v679
        %v705 = vsel %vm703, %v704, %v679
        %v706 = vshrl.u32 %v705, 4
        %v707 = vand.u32 %v705, 15
        %v708 = vsub.s32 0, %v707
        %v709 = vsel %vm703, %v708, %v707
        %vm710 = vcmp.lt.s32.totalorder %v680, 0
        %v711 = vsub.s32 0, %v680
        %v712 = vsel %vm710, %v711, %v680
        %v713 = vshrl.u32 %v712, 4
        %v714 = vand.u32 %v712, 15
        %v715 = vsub.s32 0, %v714
        %v716 = vsel %vm710, %v715, %v714
        %vm717 = vcmp.lt.s32.totalorder %v681, 0
        %v718 = vsub.s32 0, %v681
        %v719 = vsel %vm717, %v718, %v681
        %v720 = vshrl.u32 %v719, 4
        %v721 = vand.u32 %v719, 15
        %v722 = vsub.s32 0, %v721
        %v723 = vsel %vm717, %v722, %v721
        %vm724 = vcmp.lt.s32.totalorder %v682, 0
        %v725 = vsub.s32 0, %v682
        %v726 = vsel %vm724, %v725, %v682
        %v727 = vshrl.u32 %v726, 4
        %v728 = vand.u32 %v726, 15
        %v729 = vsub.s32 0, %v728
        %v730 = vsel %vm724, %v729, %v728
        %vm731 = vcmp.lt.s32.totalorder %v683, 0
        %v732 = vsub.s32 0, %v683
        %v733 = vsel %vm731, %v732, %v683
        %v734 = vshrl.u32 %v733, 4
        %v735 = vand.u32 %v733, 15
        %v736 = vsub.s32 0, %v735
        %v737 = vsel %vm731, %v736, %v735
        %vm738 = vcmp.lt.s32.totalorder %v684, 0
        %v739 = vsub.s32 0, %v684
        %v740 = vsel %vm738, %v739, %v684
        %v741 = vshrl.u32 %v740, 4
        %v742 = vand.u32 %v740, 15
        %v743 = vsub.s32 0, %v742
        %v744 = vsel %vm738, %v743, %v742
        %vm745 = vcmp.lt.s32.totalorder %v685, 0
        %v746 = vsub.s32 0, %v685
        %v747 = vsel %vm745, %v746, %v685
        %v748 = vshrl.u32 %v747, 4
        %v749 = vand.u32 %v747, 15
        %v750 = vsub.s32 0, %v749
        %v751 = vsel %vm745, %v750, %v749
        %vm752 = vcmp.lt.s32.totalorder %v686, 0
        %v753 = vsub.s32 0, %v686
        %v754 = vsel %vm752, %v753, %v686
        %v755 = vshrl.u32 %v754, 4
        %v756 = vand.u32 %v754, 15
        %v757 = vsub.s32 0, %v756
        %v758 = vsel %vm752, %v757, %v756
        %vm759 = vcmp.lt.s32.totalorder %v687, 0
        %v760 = vsub.s32 0, %v687
        %v761 = vsel %vm759, %v760, %v687
        %v762 = vshrl.u32 %v761, 4
        %v763 = vand.u32 %v761, 15
        %v764 = vsub.s32 0, %v763
        %v765 = vsel %vm759, %v764, %v763
        %vm766 = vcmp.lt.s32.totalorder %v688, 0
        %v767 = vsub.s32 0, %v688
        %v768 = vsel %vm766, %v767, %v688
        %v769 = vshrl.u32 %v768, 4
        %v770 = vand.u32 %v768, 15
        %v771 = vsub.s32 0, %v770
        %v772 = vsel %vm766, %v771, %v770
        %vm773 = vcmp.ne.s32.totalorder %v695, 0
        %vm774 = vcmp.ne.s32.totalorder %v702, 0
        %vm775 = vcmp.ne.s32.totalorder %v709, 0
        %vm776 = vcmp.ne.s32.totalorder %v716, 0
        %vm777 = vcmp.ne.s32.totalorder %v723, 0
        %vm778 = vcmp.ne.s32.totalorder %v730, 0
        %vm779 = vcmp.ne.s32.totalorder %v737, 0
        %vm780 = vcmp.ne.s32.totalorder %v744, 0
        %vm781 = vcmp.ne.s32.totalorder %v751, 0
        %vm782 = vcmp.ne.s32.totalorder %v758, 0
        %vm783 = vcmp.ne.s32.totalorder %v765, 0
        %vm784 = vcmp.ne.s32.totalorder %v772, 0
        %vm785 = vcmp.lt.s32.totalorder %v695, 0
        %vm786 = vcmp.lt.s32.totalorder %v702, 0
        %vm787 = vcmp.lt.s32.totalorder %v709, 0
        %vm788 = vcmp.lt.s32.totalorder %v716, 0
        %vm789 = vcmp.lt.s32.totalorder %v723, 0
        %vm790 = vcmp.lt.s32.totalorder %v730, 0
        %vm791 = vcmp.lt.s32.totalorder %v737, 0
        %vm792 = vcmp.lt.s32.totalorder %v744, 0
        %vm793 = vcmp.lt.s32.totalorder %v751, 0
        %vm794 = vcmp.lt.s32.totalorder %v758, 0
        %vm795 = vcmp.lt.s32.totalorder %v765, 0
        %vm796 = vcmp.lt.s32.totalorder %v772, 0
        %vm797 = vmand %vm785, %vm773
        %vm798 = vmand %vm786, %vm774
        %vm799 = vmand %vm787, %vm775
        %vm800 = vmand %vm788, %vm776
        %vm801 = vmand %vm789, %vm777
        %vm802 = vmand %vm790, %vm778
        %vm803 = vmand %vm791, %vm779
        %vm804 = vmand %vm792, %vm780
        %vm805 = vmand %vm793, %vm781
        %vm806 = vmand %vm794, %vm782
        %vm807 = vmand %vm795, %vm783
        %vm808 = vmand %vm796, %vm784
        %v809 = vadd.s32 %v695, 16
        %v810 = vadd.s32 %v702, 16
        %v811 = vadd.s32 %v709, 16
        %v812 = vadd.s32 %v716, 16
        %v813 = vadd.s32 %v723, 16
        %v814 = vadd.s32 %v730, 16
        %v815 = vadd.s32 %v737, 16
        %v816 = vadd.s32 %v744, 16
        %v817 = vadd.s32 %v751, 16
        %v818 = vadd.s32 %v758, 16
        %v819 = vadd.s32 %v765, 16
        %v820 = vadd.s32 %v772, 16
        %v821 = vsel %vm797, %v809, %v695
        %v822 = vsel %vm798, %v810, %v702
        %v823 = vsel %vm799, %v811, %v709
        %v824 = vsel %vm800, %v812, %v716
        %v825 = vsel %vm801, %v813, %v723
        %v826 = vsel %vm802, %v814, %v730
        %v827 = vsel %vm803, %v815, %v737
        %v828 = vsel %vm804, %v816, %v744
        %v829 = vsel %vm805, %v817, %v751
        %v830 = vsel %vm806, %v818, %v758
        %v831 = vsel %vm807, %v819, %v765
        %v832 = vsel %vm808, %v820, %v772
        %v833 = vld [vmem:[%s4] sm:$0x1]
        %v835 = vlaneseq
        %v836 = vshrl.u32 %v835, 7
        %v837 = vsub.s32 0, %v836
        %v838 = vrot.slane %v833, %v837
        %v840 = vld [vmem:[#allocation2 + $0x7] sm:$0xff]
        %v841 = vld [vmem:[#allocation2 + $0xf] sm:$0xff]
        %v842 = vld [vmem:[#allocation2 + $0x17] sm:$0xff]
        %v843 = vld [vmem:[#allocation2 + $0x1f] sm:$0xff]
        %v844 = vld [vmem:[#allocation2 + $0x27] sm:$0xff]
        %v845 = vld [vmem:[#allocation2 + $0x2f] sm:$0xff]
        %v846 = vld [vmem:[#allocation2 + $0x37] sm:$0xff]
        %v847 = vld [vmem:[#allocation2 + $0x3f] sm:$0xff]
        %v848 = vld [vmem:[#allocation2 + $0x47] sm:$0xff]
        %v849 = vld [vmem:[#allocation2 + $0x4f] sm:$0xff]
        %v850 = vld [vmem:[#allocation2 + $0x57] sm:$0xff]
        %v851 = vld [vmem:[#allocation2 + $0x5f] sm:$0xff]
        %v852 = vadd.s32 %v821, 4294967295
        %v853 = vadd.s32 %v822, 4294967295
        %v854 = vadd.s32 %v823, 4294967295
        %v855 = vadd.s32 %v824, 4294967295
        %v856 = vadd.s32 %v825, 4294967295
        %v857 = vadd.s32 %v826, 4294967295
        %v858 = vadd.s32 %v827, 4294967295
        %v859 = vadd.s32 %v828, 4294967295
        %v860 = vadd.s32 %v829, 4294967295
        %v861 = vadd.s32 %v830, 4294967295
        %v862 = vadd.s32 %v831, 4294967295
        %v863 = vadd.s32 %v832, 4294967295
        %vm864 = vcmp.ge.s32.totalorder %v852, 0
        %vm865 = vcmp.ge.s32.totalorder %v853, 0
        %vm866 = vcmp.ge.s32.totalorder %v854, 0
        %vm867 = vcmp.ge.s32.totalorder %v855, 0
        %vm868 = vcmp.ge.s32.totalorder %v856, 0
        %vm869 = vcmp.ge.s32.totalorder %v857, 0
        %vm870 = vcmp.ge.s32.totalorder %v858, 0
        %vm871 = vcmp.ge.s32.totalorder %v859, 0
        %vm872 = vcmp.ge.s32.totalorder %v860, 0
        %vm873 = vcmp.ge.s32.totalorder %v861, 0
        %vm874 = vcmp.ge.s32.totalorder %v862, 0
        %vm875 = vcmp.ge.s32.totalorder %v863, 0
        %vm876 = vcmp.lt.s32.totalorder %v852, 16
        %vm877 = vcmp.lt.s32.totalorder %v853, 16
        %vm878 = vcmp.lt.s32.totalorder %v854, 16
        %vm879 = vcmp.lt.s32.totalorder %v855, 16
        %vm880 = vcmp.lt.s32.totalorder %v856, 16
        %vm881 = vcmp.lt.s32.totalorder %v857, 16
        %vm882 = vcmp.lt.s32.totalorder %v858, 16
        %vm883 = vcmp.lt.s32.totalorder %v859, 16
        %vm884 = vcmp.lt.s32.totalorder %v860, 16
        %vm885 = vcmp.lt.s32.totalorder %v861, 16
        %vm886 = vcmp.lt.s32.totalorder %v862, 16
        %vm887 = vcmp.lt.s32.totalorder %v863, 16
        %vm888 = vmand %vm864, %vm876
        %vm889 = vmand %vm865, %vm877
        %vm890 = vmand %vm866, %vm878
        %vm891 = vmand %vm867, %vm879
        %vm892 = vmand %vm868, %vm880
        %vm893 = vmand %vm869, %vm881
        %vm894 = vmand %vm870, %vm882
        %vm895 = vmand %vm871, %vm883
        %vm896 = vmand %vm872, %vm884
        %vm897 = vmand %vm873, %vm885
        %vm898 = vmand %vm874, %vm886
        %vm899 = vmand %vm875, %vm887
        %v900 = vsel %vm888, %v840, 0.0
        %v901 = vsel %vm889, %v841, 0.0
        %v902 = vsel %vm890, %v842, 0.0
        %v903 = vsel %vm891, %v843, 0.0
        %v904 = vsel %vm892, %v844, 0.0
        %v905 = vsel %vm893, %v845, 0.0
        %v906 = vsel %vm894, %v846, 0.0
        %v907 = vsel %vm895, %v847, 0.0
        %v908 = vsel %vm896, %v848, 0.0
        %v909 = vsel %vm897, %v849, 0.0
        %v910 = vsel %vm898, %v850, 0.0
        %v911 = vsel %vm899, %v851, 0.0
        %v912 = vld [vmem:[%s3] sm:$0xff]
        %v913 = vld [vmem:[%s3 + $0x8] sm:$0xff]
        %v914 = vld [vmem:[%s3 + $0x10] sm:$0xff]
        %v915 = vld [vmem:[%s3 + $0x18] sm:$0xff]
        %v916 = vld [vmem:[%s3 + $0x20] sm:$0xff]
        %v917 = vld [vmem:[%s3 + $0x28] sm:$0xff]
        %v918 = vld [vmem:[%s3 + $0x30] sm:$0xff]
        %v919 = vld [vmem:[%s3 + $0x38] sm:$0xff]
        %v920 = vld [vmem:[%s3 + $0x40] sm:$0xff]
        %v921 = vld [vmem:[%s3 + $0x48] sm:$0xff]
        %v922 = vld [vmem:[%s3 + $0x50] sm:$0xff]
        %v923 = vld [vmem:[%s3 + $0x58] sm:$0xff]
        %v924 = vld [vmem:[%s3 + $0x60] sm:$0xff]
        %v925 = vld [vmem:[%s3 + $0x68] sm:$0xff]
        %v926 = vld [vmem:[%s3 + $0x70] sm:$0xff]
        %v927 = vld [vmem:[%s3 + $0x78] sm:$0xff]
        %v928 = vld [vmem:[%s3 + $0x80] sm:$0xff]
        %v929 = vld [vmem:[%s3 + $0x88] sm:$0xff]
        %v930 = vld [vmem:[%s3 + $0x90] sm:$0xff]
        %v931 = vld [vmem:[%s3 + $0x98] sm:$0xff]
        %v932 = vld [vmem:[%s3 + $0xa0] sm:$0xff]
        %v933 = vld [vmem:[%s3 + $0xa8] sm:$0xff]
        %v934 = vld [vmem:[%s3 + $0xb0] sm:$0xff]
        %v935 = vld [vmem:[%s3 + $0xb8] sm:$0xff]
        %v936 = vld [vmem:[%s3 + $0xc0] sm:$0xff]
        %v937 = vld [vmem:[%s3 + $0xc8] sm:$0xff]
        %v938 = vld [vmem:[%s3 + $0xd0] sm:$0xff]
        %v939 = vld [vmem:[%s3 + $0xd8] sm:$0xff]
        %v940 = vld [vmem:[%s3 + $0xe0] sm:$0xff]
        %v941 = vld [vmem:[%s3 + $0xe8] sm:$0xff]
        %v942 = vld [vmem:[%s3 + $0xf0] sm:$0xff]
        %v943 = vld [vmem:[%s3 + $0xf8] sm:$0xff]
        %v944 = vld [vmem:[%s3 + $0x100] sm:$0xff]
        %v945 = vld [vmem:[%s3 + $0x108] sm:$0xff]
        %v946 = vld [vmem:[%s3 + $0x110] sm:$0xff]
        %v947 = vld [vmem:[%s3 + $0x118] sm:$0xff]
        %v948 = vld [vmem:[%s3 + $0x120] sm:$0xff]
        %v949 = vld [vmem:[%s3 + $0x128] sm:$0xff]
        %v950 = vld [vmem:[%s3 + $0x130] sm:$0xff]
        %v951 = vld [vmem:[%s3 + $0x138] sm:$0xff]
        %v952 = vld [vmem:[%s3 + $0x140] sm:$0xff]
        %v953 = vld [vmem:[%s3 + $0x148] sm:$0xff]
        %v954 = vld [vmem:[%s3 + $0x150] sm:$0xff]
        %v955 = vld [vmem:[%s3 + $0x158] sm:$0xff]
        %v956 = vld [vmem:[%s3 + $0x160] sm:$0xff]
        %v957 = vld [vmem:[%s3 + $0x168] sm:$0xff]
        %v958 = vld [vmem:[%s3 + $0x170] sm:$0xff]
        %v959 = vld [vmem:[%s3 + $0x178] sm:$0xff]
        %960 = vmatprep.subr.mxu0 0.0
        %961 = vmatpush1.msra.mxu0 %v912
        %962 = vmatprep.subr.mxu0 0.0
        %963 = vmatpush1.msra.mxu0 %v913
        %964 = vmatprep.subr.mxu0 0.0
        %965 = vmatpush1.msra.mxu0 %v914
        %966 = vmatprep.subr.mxu0 0.0
        %967 = vmatpush1.msra.mxu0 %v915
        %968 = vmatprep.subr.mxu0 0.0
        %969 = vmatpush1.msra.mxu0 %v916
        %970 = vmatprep.subr.mxu0 0.0
        %971 = vmatpush1.msra.mxu0 %v917
        %972 = vmatprep.subr.mxu0 0.0
        %973 = vmatpush1.msra.mxu0 %v918
        %974 = vmatprep.subr.mxu0 0.0
        %975 = vmatpush1.msra.mxu0 %v919
        %976 = vmatprep.subr.mxu0 0.0
        %977 = vmatpush1.msra.mxu0 %v920
        %978 = vmatprep.subr.mxu0 0.0
        %979 = vmatpush1.msra.mxu0 %v921
        %980 = vmatprep.subr.mxu0 0.0
        %981 = vmatpush1.msra.mxu0 %v922
        %982 = vmatprep.subr.mxu0 0.0
        %983 = vmatpush1.msra.mxu0 %v923
        %984 = vmatprep.subr.mxu0 0.0
        %985 = vmatpush1.msra.mxu0 %v924
        %986 = vmatprep.subr.mxu0 0.0
        %987 = vmatpush1.msra.mxu0 %v925
        %988 = vmatprep.subr.mxu0 0.0
        %989 = vmatpush1.msra.mxu0 %v926
        %990 = vmatprep.subr.mxu0 0.0
        %991 = vmatpush1.msra.mxu0 %v927
        %992 = vmatprep.subr.mxu0 0.0
        %993 = vmatpush1.msra.mxu0 %v928
        %994 = vmatprep.subr.mxu0 0.0
        %995 = vmatpush1.msra.mxu0 %v929
        %996 = vmatprep.subr.mxu0 0.0
        %997 = vmatpush1.msra.mxu0 %v930
        %998 = vmatprep.subr.mxu0 0.0
        %999 = vmatpush1.msra.mxu0 %v931
        %1000 = vmatprep.subr.mxu0 0.0
        %1001 = vmatpush1.msra.mxu0 %v932
        %1002 = vmatprep.subr.mxu0 0.0
        %1003 = vmatpush1.msra.mxu0 %v933
        %1004 = vmatprep.subr.mxu0 0.0
        %1005 = vmatpush1.msra.mxu0 %v934
        %1006 = vmatprep.subr.mxu0 0.0
        %1007 = vmatpush1.msra.mxu0 %v935
        %1008 = vmatprep.subr.mxu0 0.0
        %1009 = vmatpush1.msra.mxu0 %v936
        %1010 = vmatprep.subr.mxu0 0.0
        %1011 = vmatpush1.msra.mxu0 %v937
        %1012 = vmatprep.subr.mxu0 0.0
        %1013 = vmatpush1.msra.mxu0 %v938
        %1014 = vmatprep.subr.mxu0 0.0
        %1015 = vmatpush1.msra.mxu0 %v939
        %1016 = vmatprep.subr.mxu0 0.0
        %1017 = vmatpush1.msra.mxu0 %v940
        %1018 = vmatprep.subr.mxu0 0.0
        %1019 = vmatpush1.msra.mxu0 %v941
        %1020 = vmatprep.subr.mxu0 0.0
        %1021 = vmatpush1.msra.mxu0 %v942
        %1022 = vmatprep.subr.mxu0 0.0
        %1023 = vmatpush1.msra.mxu0 %v943
        %1024 = vmatprep.mubr.f32.mxu0 %v902
        %1025 = vmatmul.mubr.f32.gmra.mrb[0].mxu0 %v900
        %v1026 = vpop.f32.mrb[0].mxu0
        %v1027 = vadd.f32 0.0, %v1026
        %v1028 = vpop.f32.mrb[0].mxu0
        %1029 = vmatprep.mubr.f32.mxu0 %v903
        %1030 = vmatmul.mubr.f32.gmra.mrb[0].mxu0 %v901
        %v1031 = vpop.f32.mrb[0].mxu0
        %v1032 = vadd.f32 0.0, %v1031
        %v1033 = vpop.f32.mrb[0].mxu0
        %1034 = vmatprep.mubr.f32.mxu0 %v904
        %1035 = vmatmul.mubr.f32.gmra.mrb[0].mxu0 %v902
        %v1036 = vpop.f32.mrb[0].mxu0
        %v1037 = vadd.f32 0.0, %v1036
        %v1038 = vpop.f32.mrb[0].mxu0
        %1039 = vmatprep.mubr.f32.mxu0 %v905
        %1040 = vmatmul.mubr.f32.gmra.mrb[0].mxu0 %v903
        %v1041 = vpop.f32.mrb[0].mxu0
        %v1042 = vadd.f32 0.0, %v1041
        %v1043 = vpop.f32.mrb[0].mxu0
        %1044 = vmatprep.mubr.f32.mxu0 %v906
        %1045 = vmatmul.mubr.f32.gmra.mrb[0].mxu0 %v904
        %v1046 = vpop.f32.mrb[0].mxu0
        %v1047 = vadd.f32 0.0, %v1046
        %v1048 = vpop.f32.mrb[0].mxu0
        %1049 = vmatprep.mubr.f32.mxu0 %v907
        %1050 = vmatmul.mubr.f32.gmra.mrb[0].mxu0 %v905
        %v1051 = vpop.f32.mrb[0].mxu0
        %v1052 = vadd.f32 0.0, %v1051
        %v1053 = vpop.f32.mrb[0].mxu0
        %1054 = vmatprep.mubr.f32.mxu0 %v908
        %1055 = vmatmul.mubr.f32.gmra.mrb[0].mxu0 %v906
        %v1056 = vpop.f32.mrb[0].mxu0
        %v1057 = vadd.f32 0.0, %v1056
        %v1058 = vpop.f32.mrb[0].mxu0
        %1059 = vmatprep.mubr.f32.mxu0 %v909
        %1060 = vmatmul.mubr.f32.gmra.mrb[0].mxu0 %v907
        %v1061 = vpop.f32.mrb[0].mxu0
        %v1062 = vadd.f32 0.0, %v1061
        %v1063 = vpop.f32.mrb[0].mxu0
        %1064 = vdwg.mxu0
        %1065 = vmatprep.subr.mxu0 0.0
        %1066 = vmatpush1.msra.mxu0 %v944
        %1067 = vmatprep.subr.mxu0 0.0
        %1068 = vmatpush1.msra.mxu0 %v945
        %1069 = vmatprep.subr.mxu0 0.0
        %1070 = vmatpush1.msra.mxu0 %v946
        %1071 = vmatprep.subr.mxu0 0.0
        %1072 = vmatpush1.msra.mxu0 %v947
        %1073 = vmatprep.subr.mxu0 0.0
        %1074 = vmatpush1.msra.mxu0 %v948
        %1075 = vmatprep.subr.mxu0 0.0
        %1076 = vmatpush1.msra.mxu0 %v949
        %1077 = vmatprep.subr.mxu0 0.0
        %1078 = vmatpush1.msra.mxu0 %v950
        %1079 = vmatprep.subr.mxu0 0.0
        %1080 = vmatpush1.msra.mxu0 %v951
        %1081 = vmatprep.subr.mxu0 0.0
        %1082 = vmatpush1.msra.mxu0 %v952
        %1083 = vmatprep.subr.mxu0 0.0
        %1084 = vmatpush1.msra.mxu0 %v953
        %1085 = vmatprep.subr.mxu0 0.0
        %1086 = vmatpush1.msra.mxu0 %v954
        %1087 = vmatprep.subr.mxu0 0.0
        %1088 = vmatpush1.msra.mxu0 %v955
        %1089 = vmatprep.subr.mxu0 0.0
        %1090 = vmatpush1.msra.mxu0 %v956
        %1091 = vmatprep.subr.mxu0 0.0
        %1092 = vmatpush1.msra.mxu0 %v957
        %1093 = vmatprep.subr.mxu0 0.0
        %1094 = vmatpush1.msra.mxu0 %v958
        %1095 = vmatprep.subr.mxu0 0.0
        %1096 = vmatpush1.msra.mxu0 %v959
        %1097 = vmatprep.subr.mxu0 0.0
        %1098 = vmatpush1.msra.mxu0 0.0
        %1099 = vmatprep.subr.mxu0 0.0
        %1100 = vmatpush1.msra.mxu0 0.0
        %1101 = vmatprep.subr.mxu0 0.0
        %1102 = vmatpush1.msra.mxu0 0.0
        %1103 = vmatprep.subr.mxu0 0.0
        %1104 = vmatpush1.msra.mxu0 0.0
        %1105 = vmatprep.subr.mxu0 0.0
        %1106 = vmatpush1.msra.mxu0 0.0
        %1107 = vmatprep.subr.mxu0 0.0
        %1108 = vmatpush1.msra.mxu0 0.0
        %1109 = vmatprep.subr.mxu0 0.0
        %1110 = vmatpush1.msra.mxu0 0.0
        %1111 = vmatprep.subr.mxu0 0.0
        %1112 = vmatpush1.msra.mxu0 0.0
        %1113 = vmatprep.subr.mxu0 0.0
        %1114 = vmatpush1.msra.mxu0 0.0
        %1115 = vmatprep.subr.mxu0 0.0
        %1116 = vmatpush1.msra.mxu0 0.0
        %1117 = vmatprep.subr.mxu0 0.0
        %1118 = vmatpush1.msra.mxu0 0.0
        %1119 = vmatprep.subr.mxu0 0.0
        %1120 = vmatpush1.msra.mxu0 0.0
        %1121 = vmatprep.subr.mxu0 0.0
        %1122 = vmatpush1.msra.mxu0 0.0
        %1123 = vmatprep.subr.mxu0 0.0
        %1124 = vmatpush1.msra.mxu0 0.0
        %1125 = vmatprep.subr.mxu0 0.0
        %1126 = vmatpush1.msra.mxu0 0.0
        %1127 = vmatprep.subr.mxu0 0.0
        %1128 = vmatpush1.msra.mxu0 0.0
        %1129 = vmatprep.mubr.f32.mxu0 0.0
        %1130 = vmatmul.mubr.f32.gmra.mrb[0].mxu0 %v904
        %v1131 = vpop.f32.mrb[0].mxu0
        %v1132 = vadd.f32 %v1027, %v1131
        %v1133 = vpop.f32.mrb[0].mxu0
        %1134 = vmatprep.mubr.f32.mxu0 0.0
        %1135 = vmatmul.mubr.f32.gmra.mrb[0].mxu0 %v905
        %v1136 = vpop.f32.mrb[0].mxu0
        %v1137 = vadd.f32 %v1032, %v1136
        %v1138 = vpop.f32.mrb[0].mxu0
        %1139 = vmatprep.mubr.f32.mxu0 0.0
        %1140 = vmatmul.mubr.f32.gmra.mrb[0].mxu0 %v906
        %v1141 = vpop.f32.mrb[0].mxu0
        %v1142 = vadd.f32 %v1037, %v1141
        %v1143 = vpop.f32.mrb[0].mxu0
        %1144 = vmatprep.mubr.f32.mxu0 0.0
        %1145 = vmatmul.mubr.f32.gmra.mrb[0].mxu0 %v907
        %v1146 = vpop.f32.mrb[0].mxu0
        %v1147 = vadd.f32 %v1042, %v1146
        %v1148 = vpop.f32.mrb[0].mxu0
        %1149 = vmatprep.mubr.f32.mxu0 0.0
        %1150 = vmatmul.mubr.f32.gmra.mrb[0].mxu0 %v908
        %v1151 = vpop.f32.mrb[0].mxu0
        %v1152 = vadd.f32 %v1047, %v1151
        %v1153 = vpop.f32.mrb[0].mxu0
        %1154 = vmatprep.mubr.f32.mxu0 0.0
        %1155 = vmatmul.mubr.f32.gmra.mrb[0].mxu0 %v909
        %v1156 = vpop.f32.mrb[0].mxu0
        %v1157 = vadd.f32 %v1052, %v1156
        %v1158 = vpop.f32.mrb[0].mxu0
        %1159 = vmatprep.mubr.f32.mxu0 0.0
        %1160 = vmatmul.mubr.f32.gmra.mrb[0].mxu0 %v910
        %v1161 = vpop.f32.mrb[0].mxu0
        %v1162 = vadd.f32 %v1057, %v1161
        %v1163 = vpop.f32.mrb[0].mxu0
        %1164 = vmatprep.mubr.f32.mxu0 0.0
        %1165 = vmatmul.mubr.f32.gmra.mrb[0].mxu0 %v911
        %v1166 = vpop.f32.mrb[0].mxu0
        %v1167 = vadd.f32 %v1062, %v1166
        %v1168 = vpop.f32.mrb[0].mxu0
        %1169 = vdwg.mxu0
        %v1170 = vadd.f32 %v838, %v1132
        %v1171 = vadd.f32 %v838, %v1137
        %v1172 = vadd.f32 %v838, %v1142
        %v1173 = vadd.f32 %v838, %v1147
        %v1174 = vadd.f32 %v838, %v1152
        %v1175 = vadd.f32 %v838, %v1157
        %v1176 = vadd.f32 %v838, %v1162
        %v1177 = vadd.f32 %v838, %v1167
        %v1178 = vld [vmem:[#allocation2 + $0x8] sm:$0xff]
        %v1179 = vld [vmem:[#allocation2 + $0x10] sm:$0xff]
        %v1180 = vld [vmem:[#allocation2 + $0x18] sm:$0xff]
        %v1181 = vld [vmem:[#allocation2 + $0x20] sm:$0xff]
        %v1182 = vld [vmem:[#allocation2 + $0x28] sm:$0xff]
        %v1183 = vld [vmem:[#allocation2 + $0x30] sm:$0xff]
        %v1184 = vld [vmem:[#allocation2 + $0x38] sm:$0xff]
        %v1185 = vld [vmem:[#allocation2 + $0x40] sm:$0xff]
        %v1186 = vld [vmem:[#allocation2 + $0x48] sm:$0xff]
        %v1187 = vld [vmem:[#allocation2 + $0x50] sm:$0xff]
        %v1188 = vld [vmem:[#allocation2 + $0x58] sm:$0xff]
        %v1189 = vld [vmem:[#allocation2 + $0x60] sm:$0xff]
        %s1190 = scalar_lea.vmem %s3, 384
        %v1191 = vld [vmem:[%s1190] sm:$0xff]
        %v1192 = vld [vmem:[%s1190 + $0x8] sm:$0xff]
        %v1193 = vld [vmem:[%s1190 + $0x10] sm:$0xff]
        %v1194 = vld [vmem:[%s1190 + $0x18] sm:$0xff]
        %v1195 = vld [vmem:[%s1190 + $0x20] sm:$0xff]
        %v1196 = vld [vmem:[%s1190 + $0x28] sm:$0xff]
        %v1197 = vld [vmem:[%s1190 + $0x30] sm:$0xff]
        %v1198 = vld [vmem:[%s1190 + $0x38] sm:$0xff]
        %v1199 = vld [vmem:[%s1190 + $0x40] sm:$0xff]
        %v1200 = vld [vmem:[%s1190 + $0x48] sm:$0xff]
        %v1201 = vld [vmem:[%s1190 + $0x50] sm:$0xff]
        %v1202 = vld [vmem:[%s1190 + $0x58] sm:$0xff]
        %v1203 = vld [vmem:[%s1190 + $0x60] sm:$0xff]
        %v1204 = vld [vmem:[%s1190 + $0x68] sm:$0xff]
        %v1205 = vld [vmem:[%s1190 + $0x70] sm:$0xff]
        %v1206 = vld [vmem:[%s1190 + $0x78] sm:$0xff]
        %v1207 = vld [vmem:[%s1190 + $0x80] sm:$0xff]
        %v1208 = vld [vmem:[%s1190 + $0x88] sm:$0xff]
        %v1209 = vld [vmem:[%s1190 + $0x90] sm:$0xff]
        %v1210 = vld [vmem:[%s1190 + $0x98] sm:$0xff]
        %v1211 = vld [vmem:[%s1190 + $0xa0] sm:$0xff]
        %v1212 = vld [vmem:[%s1190 + $0xa8] sm:$0xff]
        %v1213 = vld [vmem:[%s1190 + $0xb0] sm:$0xff]
        %v1214 = vld [vmem:[%s1190 + $0xb8] sm:$0xff]
        %v1215 = vld [vmem:[%s1190 + $0xc0] sm:$0xff]
        %v1216 = vld [vmem:[%s1190 + $0xc8] sm:$0xff]
        %v1217 = vld [vmem:[%s1190 + $0xd0] sm:$0xff]
        %v1218 = vld [vmem:[%s1190 + $0xd8] sm:$0xff]
        %v1219 = vld [vmem:[%s1190 + $0xe0] sm:$0xff]
        %v1220 = vld [vmem:[%s1190 + $0xe8] sm:$0xff]
        %v1221 = vld [vmem:[%s1190 + $0xf0] sm:$0xff]
        %v1222 = vld [vmem:[%s1190 + $0xf8] sm:$0xff]
        %v1223 = vld [vmem:[%s1190 + $0x100] sm:$0xff]
        %v1224 = vld [vmem:[%s1190 + $0x108] sm:$0xff]
        %v1225 = vld [vmem:[%s1190 + $0x110] sm:$0xff]
        %v1226 = vld [vmem:[%s1190 + $0x118] sm:$0xff]
        %v1227 = vld [vmem:[%s1190 + $0x120] sm:$0xff]
        %v1228 = vld [vmem:[%s1190 + $0x128] sm:$0xff]
        %v1229 = vld [vmem:[%s1190 + $0x130] sm:$0xff]
        %v1230 = vld [vmem:[%s1190 + $0x138] sm:$0xff]
        %v1231 = vld [vmem:[%s1190 + $0x140] sm:$0xff]
        %v1232 = vld [vmem:[%s1190 + $0x148] sm:$0xff]
        %v1233 = vld [vmem:[%s1190 + $0x150] sm:$0xff]
        %v1234 = vld [vmem:[%s1190 + $0x158] sm:$0xff]
        %v1235 = vld [vmem:[%s1190 + $0x160] sm:$0xff]
        %v1236 = vld [vmem:[%s1190 + $0x168] sm:$0xff]
        %v1237 = vld [vmem:[%s1190 + $0x170] sm:$0xff]
        %v1238 = vld [vmem:[%s1190 + $0x178] sm:$0xff]
        %1239 = vmatprep.subr.mxu0 0.0
        %1240 = vmatpush1.msra.mxu0 %v1191
        %1241 = vmatprep.subr.mxu0 0.0
        %1242 = vmatpush1.msra.mxu0 %v1192
        %1243 = vmatprep.subr.mxu0 0.0
        %1244 = vmatpush1.msra.mxu0 %v1193
        %1245 = vmatprep.subr.mxu0 0.0
        %1246 = vmatpush1.msra.mxu0 %v1194
        %1247 = vmatprep.subr.mxu0 0.0
        %1248 = vmatpush1.msra.mxu0 %v1195
        %1249 = vmatprep.subr.mxu0 0.0
        %1250 = vmatpush1.msra.mxu0 %v1196
        %1251 = vmatprep.subr.mxu0 0.0
        %1252 = vmatpush1.msra.mxu0 %v1197
        %1253 = vmatprep.subr.mxu0 0.0
        %1254 = vmatpush1.msra.mxu0 %v1198
        %1255 = vmatprep.subr.mxu0 0.0
        %1256 = vmatpush1.msra.mxu0 %v1199
        %1257 = vmatprep.subr.mxu0 0.0
        %1258 = vmatpush1.msra.mxu0 %v1200
        %1259 = vmatprep.subr.mxu0 0.0
        %1260 = vmatpush1.msra.mxu0 %v1201
        %1261 = vmatprep.subr.mxu0 0.0
        %1262 = vmatpush1.msra.mxu0 %v1202
        %1263 = vmatprep.subr.mxu0 0.0
        %1264 = vmatpush1.msra.mxu0 %v1203
        %1265 = vmatprep.subr.mxu0 0.0
        %1266 = vmatpush1.msra.mxu0 %v1204
        %1267 = vmatprep.subr.mxu0 0.0
        %1268 = vmatpush1.msra.mxu0 %v1205
        %1269 = vmatprep.subr.mxu0 0.0
        %1270 = vmatpush1.msra.mxu0 %v1206
        %1271 = vmatprep.subr.mxu0 0.0
        %1272 = vmatpush1.msra.mxu0 %v1207
        %1273 = vmatprep.subr.mxu0 0.0
        %1274 = vmatpush1.msra.mxu0 %v1208
        %1275 = vmatprep.subr.mxu0 0.0
        %1276 = vmatpush1.msra.mxu0 %v1209
        %1277 = vmatprep.subr.mxu0 0.0
        %1278 = vmatpush1.msra.mxu0 %v1210
        %1279 = vmatprep.subr.mxu0 0.0
        %1280 = vmatpush1.msra.mxu0 %v1211
        %1281 = vmatprep.subr.mxu0 0.0
        %1282 = vmatpush1.msra.mxu0 %v1212
        %1283 = vmatprep.subr.mxu0 0.0
        %1284 = vmatpush1.msra.mxu0 %v1213
        %1285 = vmatprep.subr.mxu0 0.0
        %1286 = vmatpush1.msra.mxu0 %v1214
        %1287 = vmatprep.subr.mxu0 0.0
        %1288 = vmatpush1.msra.mxu0 %v1215
        %1289 = vmatprep.subr.mxu0 0.0
        %1290 = vmatpush1.msra.mxu0 %v1216
        %1291 = vmatprep.subr.mxu0 0.0
        %1292 = vmatpush1.msra.mxu0 %v1217
        %1293 = vmatprep.subr.mxu0 0.0
        %1294 = vmatpush1.msra.mxu0 %v1218
        %1295 = vmatprep.subr.mxu0 0.0
        %1296 = vmatpush1.msra.mxu0 %v1219
        %1297 = vmatprep.subr.mxu0 0.0
        %1298 = vmatpush1.msra.mxu0 %v1220
        %1299 = vmatprep.subr.mxu0 0.0
        %1300 = vmatpush1.msra.mxu0 %v1221
        %1301 = vmatprep.subr.mxu0 0.0
        %1302 = vmatpush1.msra.mxu0 %v1222
        %1303 = vmatprep.mubr.f32.mxu0 %v1180
        %1304 = vmatmul.mubr.f32.gmra.mrb[0].mxu0 %v1178
        %v1305 = vpop.f32.mrb[0].mxu0
        %v1306 = vadd.f32 0.0, %v1305
        %v1307 = vpop.f32.mrb[0].mxu0
        %1308 = vmatprep.mubr.f32.mxu0 %v1181
        %1309 = vmatmul.mubr.f32.gmra.mrb[0].mxu0 %v1179
        %v1310 = vpop.f32.mrb[0].mxu0
        %v1311 = vadd.f32 0.0, %v1310
        %v1312 = vpop.f32.mrb[0].mxu0
        %1313 = vmatprep.mubr.f32.mxu0 %v1182
        %1314 = vmatmul.mubr.f32.gmra.mrb[0].mxu0 %v1180
        %v1315 = vpop.f32.mrb[0].mxu0
        %v1316 = vadd.f32 0.0, %v1315
        %v1317 = vpop.f32.mrb[0].mxu0
        %1318 = vmatprep.mubr.f32.mxu0 %v1183
        %1319 = vmatmul.mubr.f32.gmra.mrb[0].mxu0 %v1181
        %v1320 = vpop.f32.mrb[0].mxu0
        %v1321 = vadd.f32 0.0, %v1320
        %v1322 = vpop.f32.mrb[0].mxu0
        %1323 = vmatprep.mubr.f32.mxu0 %v1184
        %1324 = vmatmul.mubr.f32.gmra.mrb[0].mxu0 %v1182
        %v1325 = vpop.f32.mrb[0].mxu0
        %v1326 = vadd.f32 0.0, %v1325
        %v1327 = vpop.f32.mrb[0].mxu0
        %1328 = vmatprep.mubr.f32.mxu0 %v1185
        %1329 = vmatmul.mubr.f32.gmra.mrb[0].mxu0 %v1183
        %v1330 = vpop.f32.mrb[0].mxu0
        %v1331 = vadd.f32 0.0, %v1330
        %v1332 = vpop.f32.mrb[0].mxu0
        %1333 = vmatprep.mubr.f32.mxu0 %v1186
        %1334 = vmatmul.mubr.f32.gmra.mrb[0].mxu0 %v1184
        %v1335 = vpop.f32.mrb[0].mxu0
        %v1336 = vadd.f32 0.0, %v1335
        %v1337 = vpop.f32.mrb[0].mxu0
        %1338 = vmatprep.mubr.f32.mxu0 %v1187
        %1339 = vmatmul.mubr.f32.gmra.mrb[0].mxu0 %v1185
        %v1340 = vpop.f32.mrb[0].mxu0
        %v1341 = vadd.f32 0.0, %v1340
        %v1342 = vpop.f32.mrb[0].mxu0
        %1343 = vdwg.mxu0
        %1344 = vmatprep.subr.mxu0 0.0
        %1345 = vmatpush1.msra.mxu0 %v1223
        %1346 = vmatprep.subr.mxu0 0.0
        %1347 = vmatpush1.msra.mxu0 %v1224
        %1348 = vmatprep.subr.mxu0 0.0
        %1349 = vmatpush1.msra.mxu0 %v1225
        %1350 = vmatprep.subr.mxu0 0.0
        %1351 = vmatpush1.msra.mxu0 %v1226
        %1352 = vmatprep.subr.mxu0 0.0
        %1353 = vmatpush1.msra.mxu0 %v1227
        %1354 = vmatprep.subr.mxu0 0.0
        %1355 = vmatpush1.msra.mxu0 %v1228
        %1356 = vmatprep.subr.mxu0 0.0
        %1357 = vmatpush1.msra.mxu0 %v1229
        %1358 = vmatprep.subr.mxu0 0.0
        %1359 = vmatpush1.msra.mxu0 %v1230
        %1360 = vmatprep.subr.mxu0 0.0
        %1361 = vmatpush1.msra.mxu0 %v1231
        %1362 = vmatprep.subr.mxu0 0.0
        %1363 = vmatpush1.msra.mxu0 %v1232
        %1364 = vmatprep.subr.mxu0 0.0
        %1365 = vmatpush1.msra.mxu0 %v1233
        %1366 = vmatprep.subr.mxu0 0.0
        %1367 = vmatpush1.msra.mxu0 %v1234
        %1368 = vmatprep.subr.mxu0 0.0
        %1369 = vmatpush1.msra.mxu0 %v1235
        %1370 = vmatprep.subr.mxu0 0.0
        %1371 = vmatpush1.msra.mxu0 %v1236
        %1372 = vmatprep.subr.mxu0 0.0
        %1373 = vmatpush1.msra.mxu0 %v1237
        %1374 = vmatprep.subr.mxu0 0.0
        %1375 = vmatpush1.msra.mxu0 %v1238
        %1376 = vmatprep.subr.mxu0 0.0
        %1377 = vmatpush1.msra.mxu0 0.0
        %1378 = vmatprep.subr.mxu0 0.0
        %1379 = vmatpush1.msra.mxu0 0.0
        %1380 = vmatprep.subr.mxu0 0.0
        %1381 = vmatpush1.msra.mxu0 0.0
        %1382 = vmatprep.subr.mxu0 0.0
        %1383 = vmatpush1.msra.mxu0 0.0
        %1384 = vmatprep.subr.mxu0 0.0
        %1385 = vmatpush1.msra.mxu0 0.0
        %1386 = vmatprep.subr.mxu0 0.0
        %1387 = vmatpush1.msra.mxu0 0.0
        %1388 = vmatprep.subr.mxu0 0.0
        %1389 = vmatpush1.msra.mxu0 0.0
        %1390 = vmatprep.subr.mxu0 0.0
        %1391 = vmatpush1.msra.mxu0 0.0
        %1392 = vmatprep.subr.mxu0 0.0
        %1393 = vmatpush1.msra.mxu0 0.0
        %1394 = vmatprep.subr.mxu0 0.0
        %1395 = vmatpush1.msra.mxu0 0.0
        %1396 = vmatprep.subr.mxu0 0.0
        %1397 = vmatpush1.msra.mxu0 0.0
        %1398 = vmatprep.subr.mxu0 0.0
        %1399 = vmatpush1.msra.mxu0 0.0
        %1400 = vmatprep.subr.mxu0 0.0
        %1401 = vmatpush1.msra.mxu0 0.0
        %1402 = vmatprep.subr.mxu0 0.0
        %1403 = vmatpush1.msra.mxu0 0.0
        %1404 = vmatprep.subr.mxu0 0.0
        %1405 = vmatpush1.msra.mxu0 0.0
        %1406 = vmatprep.subr.mxu0 0.0
        %1407 = vmatpush1.msra.mxu0 0.0
        %1408 = vmatprep.mubr.f32.mxu0 0.0
        %1409 = vmatmul.mubr.f32.gmra.mrb[0].mxu0 %v1182
        %v1410 = vpop.f32.mrb[0].mxu0
        %v1411 = vadd.f32 %v1306, %v1410
        %v1412 = vpop.f32.mrb[0].mxu0
        %1413 = vmatprep.mubr.f32.mxu0 0.0
        %1414 = vmatmul.mubr.f32.gmra.mrb[0].mxu0 %v1183
        %v1415 = vpop.f32.mrb[0].mxu0
        %v1416 = vadd.f32 %v1311, %v1415
        %v1417 = vpop.f32.mrb[0].mxu0
        %1418 = vmatprep.mubr.f32.mxu0 0.0
        %1419 = vmatmul.mubr.f32.gmra.mrb[0].mxu0 %v1184
        %v1420 = vpop.f32.mrb[0].mxu0
        %v1421 = vadd.f32 %v1316, %v1420
        %v1422 = vpop.f32.mrb[0].mxu0
        %1423 = vmatprep.mubr.f32.mxu0 0.0
        %1424 = vmatmul.mubr.f32.gmra.mrb[0].mxu0 %v1185
        %v1425 = vpop.f32.mrb[0].mxu0
        %v1426 = vadd.f32 %v1321, %v1425
        %v1427 = vpop.f32.mrb[0].mxu0
        %1428 = vmatprep.mubr.f32.mxu0 0.0
        %1429 = vmatmul.mubr.f32.gmra.mrb[0].mxu0 %v1186
        %v1430 = vpop.f32.mrb[0].mxu0
        %v1431 = vadd.f32 %v1326, %v1430
        %v1432 = vpop.f32.mrb[0].mxu0
        %1433 = vmatprep.mubr.f32.mxu0 0.0
        %1434 = vmatmul.mubr.f32.gmra.mrb[0].mxu0 %v1187
        %v1435 = vpop.f32.mrb[0].mxu0
        %v1436 = vadd.f32 %v1331, %v1435
        %v1437 = vpop.f32.mrb[0].mxu0
        %1438 = vmatprep.mubr.f32.mxu0 0.0
        %1439 = vmatmul.mubr.f32.gmra.mrb[0].mxu0 %v1188
        %v1440 = vpop.f32.mrb[0].mxu0
        %v1441 = vadd.f32 %v1336, %v1440
        %v1442 = vpop.f32.mrb[0].mxu0
        %1443 = vmatprep.mubr.f32.mxu0 0.0
        %1444 = vmatmul.mubr.f32.gmra.mrb[0].mxu0 %v1189
        %v1445 = vpop.f32.mrb[0].mxu0
        %v1446 = vadd.f32 %v1341, %v1445
        %v1447 = vpop.f32.mrb[0].mxu0
        %1448 = vdwg.mxu0
        %v1449 = vadd.f32 %v1170, %v1411
        %v1450 = vadd.f32 %v1171, %v1416
        %v1451 = vadd.f32 %v1172, %v1421
        %v1452 = vadd.f32 %v1173, %v1426
        %v1453 = vadd.f32 %v1174, %v1431
        %v1454 = vadd.f32 %v1175, %v1436
        %v1455 = vadd.f32 %v1176, %v1441
        %v1456 = vadd.f32 %v1177, %v1446
        %v1457 = vld [vmem:[#allocation2 + $0x9] sm:$0xff]
        %v1458 = vld [vmem:[#allocation2 + $0x11] sm:$0xff]
        %v1459 = vld [vmem:[#allocation2 + $0x19] sm:$0xff]
        %v1460 = vld [vmem:[#allocation2 + $0x21] sm:$0xff]
        %v1461 = vld [vmem:[#allocation2 + $0x29] sm:$0xff]
        %v1462 = vld [vmem:[#allocation2 + $0x31] sm:$0xff]
        %v1463 = vld [vmem:[#allocation2 + $0x39] sm:$0xff]
        %v1464 = vld [vmem:[#allocation2 + $0x41] sm:$0xff]
        %v1465 = vld [vmem:[#allocation2 + $0x49] sm:$0xff]
        %v1466 = vld [vmem:[#allocation2 + $0x51] sm:$0xff]
        %v1467 = vld [vmem:[#allocation2 + $0x59] sm:$0xff]
        %v1468 = vld [vmem:[#allocation2 + $0x61] sm:$0xff]
        %v1469 = vadd.s32 %v821, 1
        %v1470 = vadd.s32 %v822, 1
        %v1471 = vadd.s32 %v823, 1
        %v1472 = vadd.s32 %v824, 1
        %v1473 = vadd.s32 %v825, 1
        %v1474 = vadd.s32 %v826, 1
        %v1475 = vadd.s32 %v827, 1
        %v1476 = vadd.s32 %v828, 1
        %v1477 = vadd.s32 %v829, 1
        %v1478 = vadd.s32 %v830, 1
        %v1479 = vadd.s32 %v831, 1
        %v1480 = vadd.s32 %v832, 1
        %vm1481 = vcmp.ge.s32.totalorder %v1469, 0
        %vm1482 = vcmp.ge.s32.totalorder %v1470, 0
        %vm1483 = vcmp.ge.s32.totalorder %v1471, 0
        %vm1484 = vcmp.ge.s32.totalorder %v1472, 0
        %vm1485 = vcmp.ge.s32.totalorder %v1473, 0
        %vm1486 = vcmp.ge.s32.totalorder %v1474, 0
        %vm1487 = vcmp.ge.s32.totalorder %v1475, 0
        %vm1488 = vcmp.ge.s32.totalorder %v1476, 0
        %vm1489 = vcmp.ge.s32.totalorder %v1477, 0
        %vm1490 = vcmp.ge.s32.totalorder %v1478, 0
        %vm1491 = vcmp.ge.s32.totalorder %v1479, 0
        %vm1492 = vcmp.ge.s32.totalorder %v1480, 0
        %vm1493 = vcmp.lt.s32.totalorder %v1469, 16
        %vm1494 = vcmp.lt.s32.totalorder %v1470, 16
        %vm1495 = vcmp.lt.s32.totalorder %v1471, 16
        %vm1496 = vcmp.lt.s32.totalorder %v1472, 16
        %vm1497 = vcmp.lt.s32.totalorder %v1473, 16
        %vm1498 = vcmp.lt.s32.totalorder %v1474, 16
        %vm1499 = vcmp.lt.s32.totalorder %v1475, 16
        %vm1500 = vcmp.lt.s32.totalorder %v1476, 16
        %vm1501 = vcmp.lt.s32.totalorder %v1477, 16
        %vm1502 = vcmp.lt.s32.totalorder %v1478, 16
        %vm1503 = vcmp.lt.s32.totalorder %v1479, 16
        %vm1504 = vcmp.lt.s32.totalorder %v1480, 16
        %vm1505 = vmand %vm1481, %vm1493
        %vm1506 = vmand %vm1482, %vm1494
        %vm1507 = vmand %vm1483, %vm1495
        %vm1508 = vmand %vm1484, %vm1496
        %vm1509 = vmand %vm1485, %vm1497
        %vm1510 = vmand %vm1486, %vm1498
        %vm1511 = vmand %vm1487, %vm1499
        %vm1512 = vmand %vm1488, %vm1500
        %vm1513 = vmand %vm1489, %vm1501
        %vm1514 = vmand %vm1490, %vm1502
        %vm1515 = vmand %vm1491, %vm1503
        %vm1516 = vmand %vm1492, %vm1504
        %v1517 = vsel %vm1505, %v1457, 0.0
        %v1518 = vsel %vm1506, %v1458, 0.0
        %v1519 = vsel %vm1507, %v1459, 0.0
        %v1520 = vsel %vm1508, %v1460, 0.0
        %v1521 = vsel %vm1509, %v1461, 0.0
        %v1522 = vsel %vm1510, %v1462, 0.0
        %v1523 = vsel %vm1511, %v1463, 0.0
        %v1524 = vsel %vm1512, %v1464, 0.0
        %v1525 = vsel %vm1513, %v1465, 0.0
        %v1526 = vsel %vm1514, %v1466, 0.0
        %v1527 = vsel %vm1515, %v1467, 0.0
        %v1528 = vsel %vm1516, %v1468, 0.0
        %s1529 = scalar_lea.vmem %s3, 768
        %v1530 = vld [vmem:[%s1529] sm:$0xff]
        %v1531 = vld [vmem:[%s1529 + $0x8] sm:$0xff]
        %v1532 = vld [vmem:[%s1529 + $0x10] sm:$0xff]
        %v1533 = vld [vmem:[%s1529 + $0x18] sm:$0xff]
        %v1534 = vld [vmem:[%s1529 + $0x20] sm:$0xff]
        %v1535 = vld [vmem:[%s1529 + $0x28] sm:$0xff]
        %v1536 = vld [vmem:[%s1529 + $0x30] sm:$0xff]
        %v1537 = vld [vmem:[%s1529 + $0x38] sm:$0xff]
        %v1538 = vld [vmem:[%s1529 + $0x40] sm:$0xff]
        %v1539 = vld [vmem:[%s1529 + $0x48] sm:$0xff]
        %v1540 = vld [vmem:[%s1529 + $0x50] sm:$0xff]
        %v1541 = vld [vmem:[%s1529 + $0x58] sm:$0xff]
        %v1542 = vld [vmem:[%s1529 + $0x60] sm:$0xff]
        %v1543 = vld [vmem:[%s1529 + $0x68] sm:$0xff]
        %v1544 = vld [vmem:[%s1529 + $0x70] sm:$0xff]
        %v1545 = vld [vmem:[%s1529 + $0x78] sm:$0xff]
        %v1546 = vld [vmem:[%s1529 + $0x80] sm:$0xff]
        %v1547 = vld [vmem:[%s1529 + $0x88] sm:$0xff]
        %v1548 = vld [vmem:[%s1529 + $0x90] sm:$0xff]
        %v1549 = vld [vmem:[%s1529 + $0x98] sm:$0xff]
        %v1550 = vld [vmem:[%s1529 + $0xa0] sm:$0xff]
        %v1551 = vld [vmem:[%s1529 + $0xa8] sm:$0xff]
        %v1552 = vld [vmem:[%s1529 + $0xb0] sm:$0xff]
        %v1553 = vld [vmem:[%s1529 + $0xb8] sm:$0xff]
        %v1554 = vld [vmem:[%s1529 + $0xc0] sm:$0xff]
        %v1555 = vld [vmem:[%s1529 + $0xc8] sm:$0xff]
        %v1556 = vld [vmem:[%s1529 + $0xd0] sm:$0xff]
        %v1557 = vld [vmem:[%s1529 + $0xd8] sm:$0xff]
        %v1558 = vld [vmem:[%s1529 + $0xe0] sm:$0xff]
        %v1559 = vld [vmem:[%s1529 + $0xe8] sm:$0xff]
        %v1560 = vld [vmem:[%s1529 + $0xf0] sm:$0xff]
        %v1561 = vld [vmem:[%s1529 + $0xf8] sm:$0xff]
        %v1562 = vld [vmem:[%s1529 + $0x100] sm:$0xff]
        %v1563 = vld [vmem:[%s1529 + $0x108] sm:$0xff]
        %v1564 = vld [vmem:[%s1529 + $0x110] sm:$0xff]
        %v1565 = vld [vmem:[%s1529 + $0x118] sm:$0xff]
        %v1566 = vld [vmem:[%s1529 + $0x120] sm:$0xff]
        %v1567 = vld [vmem:[%s1529 + $0x128] sm:$0xff]
        %v1568 = vld [vmem:[%s1529 + $0x130] sm:$0xff]
        %v1569 = vld [vmem:[%s1529 + $0x138] sm:$0xff]
        %v1570 = vld [vmem:[%s1529 + $0x140] sm:$0xff]
        %v1571 = vld [vmem:[%s1529 + $0x148] sm:$0xff]
        %v1572 = vld [vmem:[%s1529 + $0x150] sm:$0xff]
        %v1573 = vld [vmem:[%s1529 + $0x158] sm:$0xff]
        %v1574 = vld [vmem:[%s1529 + $0x160] sm:$0xff]
        %v1575 = vld [vmem:[%s1529 + $0x168] sm:$0xff]
        %v1576 = vld [vmem:[%s1529 + $0x170] sm:$0xff]
        %v1577 = vld [vmem:[%s1529 + $0x178] sm:$0xff]
        %1578 = vmatprep.subr.mxu0 0.0
        %1579 = vmatpush1.msra.mxu0 %v1530
        %1580 = vmatprep.subr.mxu0 0.0
        %1581 = vmatpush1.msra.mxu0 %v1531
        %1582 = vmatprep.subr.mxu0 0.0
        %1583 = vmatpush1.msra.mxu0 %v1532
        %1584 = vmatprep.subr.mxu0 0.0
        %1585 = vmatpush1.msra.mxu0 %v1533
        %1586 = vmatprep.subr.mxu0 0.0
        %1587 = vmatpush1.msra.mxu0 %v1534
        %1588 = vmatprep.subr.mxu0 0.0
        %1589 = vmatpush1.msra.mxu0 %v1535
        %1590 = vmatprep.subr.mxu0 0.0
        %1591 = vmatpush1.msra.mxu0 %v1536
        %1592 = vmatprep.subr.mxu0 0.0
        %1593 = vmatpush1.msra.mxu0 %v1537
        %1594 = vmatprep.subr.mxu0 0.0
        %1595 = vmatpush1.msra.mxu0 %v1538
        %1596 = vmatprep.subr.mxu0 0.0
        %1597 = vmatpush1.msra.mxu0 %v1539
        %1598 = vmatprep.subr.mxu0 0.0
        %1599 = vmatpush1.msra.mxu0 %v1540
        %1600 = vmatprep.subr.mxu0 0.0
        %1601 = vmatpush1.msra.mxu0 %v1541
        %1602 = vmatprep.subr.mxu0 0.0
        %1603 = vmatpush1.msra.mxu0 %v1542
        %1604 = vmatprep.subr.mxu0 0.0
        %1605 = vmatpush1.msra.mxu0 %v1543
        %1606 = vmatprep.subr.mxu0 0.0
        %1607 = vmatpush1.msra.mxu0 %v1544
        %1608 = vmatprep.subr.mxu0 0.0
        %1609 = vmatpush1.msra.mxu0 %v1545
        %1610 = vmatprep.subr.mxu0 0.0
        %1611 = vmatpush1.msra.mxu0 %v1546
        %1612 = vmatprep.subr.mxu0 0.0
        %1613 = vmatpush1.msra.mxu0 %v1547
        %1614 = vmatprep.subr.mxu0 0.0
        %1615 = vmatpush1.msra.mxu0 %v1548
        %1616 = vmatprep.subr.mxu0 0.0
        %1617 = vmatpush1.msra.mxu0 %v1549
        %1618 = vmatprep.subr.mxu0 0.0
        %1619 = vmatpush1.msra.mxu0 %v1550
        %1620 = vmatprep.subr.mxu0 0.0
        %1621 = vmatpush1.msra.mxu0 %v1551
        %1622 = vmatprep.subr.mxu0 0.0
        %1623 = vmatpush1.msra.mxu0 %v1552
        %1624 = vmatprep.subr.mxu0 0.0
        %1625 = vmatpush1.msra.mxu0 %v1553
        %1626 = vmatprep.subr.mxu0 0.0
        %1627 = vmatpush1.msra.mxu0 %v1554
        %1628 = vmatprep.subr.mxu0 0.0
        %1629 = vmatpush1.msra.mxu0 %v1555
        %1630 = vmatprep.subr.mxu0 0.0
        %1631 = vmatpush1.msra.mxu0 %v1556
        %1632 = vmatprep.subr.mxu0 0.0
        %1633 = vmatpush1.msra.mxu0 %v1557
        %1634 = vmatprep.subr.mxu0 0.0
        %1635 = vmatpush1.msra.mxu0 %v1558
        %1636 = vmatprep.subr.mxu0 0.0
        %1637 = vmatpush1.msra.mxu0 %v1559
        %1638 = vmatprep.subr.mxu0 0.0
        %1639 = vmatpush1.msra.mxu0 %v1560
        %1640 = vmatprep.subr.mxu0 0.0
        %1641 = vmatpush1.msra.mxu0 %v1561
        %1642 = vmatprep.mubr.f32.mxu0 %v1519
        %1643 = vmatmul.mubr.f32.gmra.mrb[0].mxu0 %v1517
        %v1644 = vpop.f32.mrb[0].mxu0
        %v1645 = vadd.f32 0.0, %v1644
        %v1646 = vpop.f32.mrb[0].mxu0
        %1647 = vmatprep.mubr.f32.mxu0 %v1520
        %1648 = vmatmul.mubr.f32.gmra.mrb[0].mxu0 %v1518
        %v1649 = vpop.f32.mrb[0].mxu0
        %v1650 = vadd.f32 0.0, %v1649
        %v1651 = vpop.f32.mrb[0].mxu0
        %1652 = vmatprep.mubr.f32.mxu0 %v1521
        %1653 = vmatmul.mubr.f32.gmra.mrb[0].mxu0 %v1519
        %v1654 = vpop.f32.mrb[0].mxu0
        %v1655 = vadd.f32 0.0, %v1654
        %v1656 = vpop.f32.mrb[0].mxu0
        %1657 = vmatprep.mubr.f32.mxu0 %v1522
        %1658 = vmatmul.mubr.f32.gmra.mrb[0].mxu0 %v1520
        %v1659 = vpop.f32.mrb[0].mxu0
        %v1660 = vadd.f32 0.0, %v1659
        %v1661 = vpop.f32.mrb[0].mxu0
        %1662 = vmatprep.mubr.f32.mxu0 %v1523
        %1663 = vmatmul.mubr.f32.gmra.mrb[0].mxu0 %v1521
        %v1664 = vpop.f32.mrb[0].mxu0
        %v1665 = vadd.f32 0.0, %v1664
        %v1666 = vpop.f32.mrb[0].mxu0
        %1667 = vmatprep.mubr.f32.mxu0 %v1524
        %1668 = vmatmul.mubr.f32.gmra.mrb[0].mxu0 %v1522
        %v1669 = vpop.f32.mrb[0].mxu0
        %v1670 = vadd.f32 0.0, %v1669
        %v1671 = vpop.f32.mrb[0].mxu0
        %1672 = vmatprep.mubr.f32.mxu0 %v1525
        %1673 = vmatmul.mubr.f32.gmra.mrb[0].mxu0 %v1523
        %v1674 = vpop.f32.mrb[0].mxu0
        %v1675 = vadd.f32 0.0, %v1674
        %v1676 = vpop.f32.mrb[0].mxu0
        %1677 = vmatprep.mubr.f32.mxu0 %v1526
        %1678 = vmatmul.mubr.f32.gmra.mrb[0].mxu0 %v1524
        %v1679 = vpop.f32.mrb[0].mxu0
        %v1680 = vadd.f32 0.0, %v1679
        %v1681 = vpop.f32.mrb[0].mxu0
        %1682 = vdwg.mxu0
        %1683 = vmatprep.subr.mxu0 0.0
        %1684 = vmatpush1.msra.mxu0 %v1562
        %1685 = vmatprep.subr.mxu0 0.0
        %1686 = vmatpush1.msra.mxu0 %v1563
        %1687 = vmatprep.subr.mxu0 0.0
        %1688 = vmatpush1.msra.mxu0 %v1564
        %1689 = vmatprep.subr.mxu0 0.0
        %1690 = vmatpush1.msra.mxu0 %v1565
        %1691 = vmatprep.subr.mxu0 0.0
        %1692 = vmatpush1.msra.mxu0 %v1566
        %1693 = vmatprep.subr.mxu0 0.0
        %1694 = vmatpush1.msra.mxu0 %v1567
        %1695 = vmatprep.subr.mxu0 0.0
        %1696 = vmatpush1.msra.mxu0 %v1568
        %1697 = vmatprep.subr.mxu0 0.0
        %1698 = vmatpush1.msra.mxu0 %v1569
        %1699 = vmatprep.subr.mxu0 0.0
        %1700 = vmatpush1.msra.mxu0 %v1570
        %1701 = vmatprep.subr.mxu0 0.0
        %1702 = vmatpush1.msra.mxu0 %v1571
        %1703 = vmatprep.subr.mxu0 0.0
        %1704 = vmatpush1.msra.mxu0 %v1572
        %1705 = vmatprep.subr.mxu0 0.0
        %1706 = vmatpush1.msra.mxu0 %v1573
        %1707 = vmatprep.subr.mxu0 0.0
        %1708 = vmatpush1.msra.mxu0 %v1574
        %1709 = vmatprep.subr.mxu0 0.0
        %1710 = vmatpush1.msra.mxu0 %v1575
        %1711 = vmatprep.subr.mxu0 0.0
        %1712 = vmatpush1.msra.mxu0 %v1576
        %1713 = vmatprep.subr.mxu0 0.0
        %1714 = vmatpush1.msra.mxu0 %v1577
        %1715 = vmatprep.subr.mxu0 0.0
        %1716 = vmatpush1.msra.mxu0 0.0
        %1717 = vmatprep.subr.mxu0 0.0
        %1718 = vmatpush1.msra.mxu0 0.0
        %1719 = vmatprep.subr.mxu0 0.0
        %1720 = vmatpush1.msra.mxu0 0.0
        %1721 = vmatprep.subr.mxu0 0.0
        %1722 = vmatpush1.msra.mxu0 0.0
        %1723 = vmatprep.subr.mxu0 0.0
        %1724 = vmatpush1.msra.mxu0 0.0
        %1725 = vmatprep.subr.mxu0 0.0
        %1726 = vmatpush1.msra.mxu0 0.0
        %1727 = vmatprep.subr.mxu0 0.0
        %1728 = vmatpush1.msra.mxu0 0.0
        %1729 = vmatprep.subr.mxu0 0.0
        %1730 = vmatpush1.msra.mxu0 0.0
        %1731 = vmatprep.subr.mxu0 0.0
        %1732 = vmatpush1.msra.mxu0 0.0
        %1733 = vmatprep.subr.mxu0 0.0
        %1734 = vmatpush1.msra.mxu0 0.0
        %1735 = vmatprep.subr.mxu0 0.0
        %1736 = vmatpush1.msra.mxu0 0.0
        %1737 = vmatprep.subr.mxu0 0.0
        %1738 = vmatpush1.msra.mxu0 0.0
        %1739 = vmatprep.subr.mxu0 0.0
        %1740 = vmatpush1.msra.mxu0 0.0
        %1741 = vmatprep.subr.mxu0 0.0
        %1742 = vmatpush1.msra.mxu0 0.0
        %1743 = vmatprep.subr.mxu0 0.0
        %1744 = vmatpush1.msra.mxu0 0.0
        %1745 = vmatprep.subr.mxu0 0.0
        %1746 = vmatpush1.msra.mxu0 0.0
        %1747 = vmatprep.mubr.f32.mxu0 0.0
        %1748 = vmatmul.mubr.f32.gmra.mrb[0].mxu0 %v1521
        %v1749 = vpop.f32.mrb[0].mxu0
        %v1750 = vadd.f32 %v1645, %v1749
        %v1751 = vpop.f32.mrb[0].mxu0
        %1752 = vmatprep.mubr.f32.mxu0 0.0
        %1753 = vmatmul.mubr.f32.gmra.mrb[0].mxu0 %v1522
        %v1754 = vpop.f32.mrb[0].mxu0
        %v1755 = vadd.f32 %v1650, %v1754
        %v1756 = vpop.f32.mrb[0].mxu0
        %1757 = vmatprep.mubr.f32.mxu0 0.0
        %1758 = vmatmul.mubr.f32.gmra.mrb[0].mxu0 %v1523
        %v1759 = vpop.f32.mrb[0].mxu0
        %v1760 = vadd.f32 %v1655, %v1759
        %v1761 = vpop.f32.mrb[0].mxu0
        %1762 = vmatprep.mubr.f32.mxu0 0.0
        %1763 = vmatmul.mubr.f32.gmra.mrb[0].mxu0 %v1524
        %v1764 = vpop.f32.mrb[0].mxu0
        %v1765 = vadd.f32 %v1660, %v1764
        %v1766 = vpop.f32.mrb[0].mxu0
        %1767 = vmatprep.mubr.f32.mxu0 0.0
        %1768 = vmatmul.mubr.f32.gmra.mrb[0].mxu0 %v1525
        %v1769 = vpop.f32.mrb[0].mxu0
        %v1770 = vadd.f32 %v1665, %v1769
        %v1771 = vpop.f32.mrb[0].mxu0
        %1772 = vmatprep.mubr.f32.mxu0 0.0
        %1773 = vmatmul.mubr.f32.gmra.mrb[0].mxu0 %v1526
        %v1774 = vpop.f32.mrb[0].mxu0
        %v1775 = vadd.f32 %v1670, %v1774
        %v1776 = vpop.f32.mrb[0].mxu0
        %1777 = vmatprep.mubr.f32.mxu0 0.0
        %1778 = vmatmul.mubr.f32.gmra.mrb[0].mxu0 %v1527
        %v1779 = vpop.f32.mrb[0].mxu0
        %v1780 = vadd.f32 %v1675, %v1779
        %v1781 = vpop.f32.mrb[0].mxu0
        %1782 = vmatprep.mubr.f32.mxu0 0.0
        %1783 = vmatmul.mubr.f32.gmra.mrb[0].mxu0 %v1528
        %v1784 = vpop.f32.mrb[0].mxu0
        %v1785 = vadd.f32 %v1680, %v1784
        %v1786 = vpop.f32.mrb[0].mxu0
        %1787 = vdwg.mxu0
        %v1788 = vadd.f32 %v1449, %v1750
        %v1789 = vadd.f32 %v1450, %v1755
        %v1790 = vadd.f32 %v1451, %v1760
        %v1791 = vadd.f32 %v1452, %v1765
        %v1792 = vadd.f32 %v1453, %v1770
        %v1793 = vadd.f32 %v1454, %v1775
        %v1794 = vadd.f32 %v1455, %v1780
        %v1795 = vadd.f32 %v1456, %v1785
        %v1796 = vmax.f32 %v1788, 0.0
        %v1797 = vmax.f32 %v1789, 0.0
        %v1798 = vmax.f32 %v1790, 0.0
        %v1799 = vmax.f32 %v1791, 0.0
        %v1800 = vmax.f32 %v1792, 0.0
        %v1801 = vmax.f32 %v1793, 0.0
        %v1802 = vmax.f32 %v1794, 0.0
        %v1803 = vmax.f32 %v1795, 0.0
        %v1804 = vld [vmem:[%s300] sm:$0xff]
        %v1805 = vld [vmem:[%s300 + $0x8] sm:$0xff]
        %v1806 = vld [vmem:[%s300 + $0x10] sm:$0xff]
        %v1807 = vld [vmem:[%s300 + $0x18] sm:$0xff]
        %v1808 = vld [vmem:[%s300 + $0x20] sm:$0xff]
        %v1809 = vld [vmem:[%s300 + $0x28] sm:$0xff]
        %v1810 = vld [vmem:[%s300 + $0x30] sm:$0xff]
        %v1811 = vld [vmem:[%s300 + $0x38] sm:$0xff]
        %v1812 = vld [vmem:[%s5] sm:$0xff]
        %v1813 = vld [vmem:[%s5 + $0x8] sm:$0xff]
        %v1814 = vld [vmem:[%s5 + $0x10] sm:$0xff]
        %v1815 = vld [vmem:[%s5 + $0x18] sm:$0xff]
        %v1816 = vld [vmem:[%s5 + $0x20] sm:$0xff]
        %v1817 = vld [vmem:[%s5 + $0x28] sm:$0xff]
        %v1818 = vld [vmem:[%s5 + $0x30] sm:$0xff]
        %v1819 = vld [vmem:[%s5 + $0x38] sm:$0xff]
        %v1820 = vld [vmem:[%s5 + $0x40] sm:$0xff]
        %v1821 = vld [vmem:[%s5 + $0x48] sm:$0xff]
        %v1822 = vld [vmem:[%s5 + $0x50] sm:$0xff]
        %v1823 = vld [vmem:[%s5 + $0x58] sm:$0xff]
        %v1824 = vld [vmem:[%s5 + $0x60] sm:$0xff]
        %v1825 = vld [vmem:[%s5 + $0x68] sm:$0xff]
        %v1826 = vld [vmem:[%s5 + $0x70] sm:$0xff]
        %v1827 = vld [vmem:[%s5 + $0x78] sm:$0xff]
        %v1828 = vld [vmem:[%s6] sm:$0x1]
        %v1830 = vlaneseq
        %v1831 = vshrl.u32 %v1830, 7
        %v1832 = vsub.s32 0, %v1831
        %v1833 = vrot.slane %v1828, %v1832
        %1835 = vmatprep.subr.mxu0 0.0
        %1836 = vmatpush1.msra.mxu0 %v1812
        %1837 = vmatprep.subr.mxu0 0.0
        %1838 = vmatpush1.msra.mxu0 %v1813
        %1839 = vmatprep.subr.mxu0 0.0
        %1840 = vmatpush1.msra.mxu0 %v1814
        %1841 = vmatprep.subr.mxu0 0.0
        %1842 = vmatpush1.msra.mxu0 %v1815
        %1843 = vmatprep.subr.mxu0 0.0
        %1844 = vmatpush1.msra.mxu0 %v1816
        %1845 = vmatprep.subr.mxu0 0.0
        %1846 = vmatpush1.msra.mxu0 %v1817
        %1847 = vmatprep.subr.mxu0 0.0
        %1848 = vmatpush1.msra.mxu0 %v1818
        %1849 = vmatprep.subr.mxu0 0.0
        %1850 = vmatpush1.msra.mxu0 %v1819
        %1851 = vmatprep.subr.mxu0 0.0
        %1852 = vmatpush1.msra.mxu0 %v1820
        %1853 = vmatprep.subr.mxu0 0.0
        %1854 = vmatpush1.msra.mxu0 %v1821
        %1855 = vmatprep.subr.mxu0 0.0
        %1856 = vmatpush1.msra.mxu0 %v1822
        %1857 = vmatprep.subr.mxu0 0.0
        %1858 = vmatpush1.msra.mxu0 %v1823
        %1859 = vmatprep.subr.mxu0 0.0
        %1860 = vmatpush1.msra.mxu0 %v1824
        %1861 = vmatprep.subr.mxu0 0.0
        %1862 = vmatpush1.msra.mxu0 %v1825
        %1863 = vmatprep.subr.mxu0 0.0
        %1864 = vmatpush1.msra.mxu0 %v1826
        %1865 = vmatprep.subr.mxu0 0.0
        %1866 = vmatpush1.msra.mxu0 %v1827
        %1867 = vmatprep.subr.mxu0 0.0
        %1868 = vmatpush1.msra.mxu0 0.0
        %1869 = vmatprep.subr.mxu0 0.0
        %1870 = vmatpush1.msra.mxu0 0.0
        %1871 = vmatprep.subr.mxu0 0.0
        %1872 = vmatpush1.msra.mxu0 0.0
        %1873 = vmatprep.subr.mxu0 0.0
        %1874 = vmatpush1.msra.mxu0 0.0
        %1875 = vmatprep.subr.mxu0 0.0
        %1876 = vmatpush1.msra.mxu0 0.0
        %1877 = vmatprep.subr.mxu0 0.0
        %1878 = vmatpush1.msra.mxu0 0.0
        %1879 = vmatprep.subr.mxu0 0.0
        %1880 = vmatpush1.msra.mxu0 0.0
        %1881 = vmatprep.subr.mxu0 0.0
        %1882 = vmatpush1.msra.mxu0 0.0
        %1883 = vmatprep.subr.mxu0 0.0
        %1884 = vmatpush1.msra.mxu0 0.0
        %1885 = vmatprep.subr.mxu0 0.0
        %1886 = vmatpush1.msra.mxu0 0.0
        %1887 = vmatprep.subr.mxu0 0.0
        %1888 = vmatpush1.msra.mxu0 0.0
        %1889 = vmatprep.subr.mxu0 0.0
        %1890 = vmatpush1.msra.mxu0 0.0
        %1891 = vmatprep.subr.mxu0 0.0
        %1892 = vmatpush1.msra.mxu0 0.0
        %1893 = vmatprep.subr.mxu0 0.0
        %1894 = vmatpush1.msra.mxu0 0.0
        %1895 = vmatprep.subr.mxu0 0.0
        %1896 = vmatpush1.msra.mxu0 0.0
        %1897 = vmatprep.subr.mxu0 0.0
        %1898 = vmatpush1.msra.mxu0 0.0
        %1899 = vmatprep.mubr.f32.mxu0 0.0
        %1900 = vmatmul.mubr.f32.gmra.mrb[0].mxu0 %v1796
        %v1901 = vpop.f32.mrb[0].mxu0
        %v1902 = vadd.f32 %v1833, %v1901
        %v1903 = vpop.f32.mrb[0].mxu0
        %1904 = vmatprep.mubr.f32.mxu0 0.0
        %1905 = vmatmul.mubr.f32.gmra.mrb[0].mxu0 %v1797
        %v1906 = vpop.f32.mrb[0].mxu0
        %v1907 = vadd.f32 %v1833, %v1906
        %v1908 = vpop.f32.mrb[0].mxu0
        %1909 = vmatprep.mubr.f32.mxu0 0.0
        %1910 = vmatmul.mubr.f32.gmra.mrb[0].mxu0 %v1798
        %v1911 = vpop.f32.mrb[0].mxu0
        %v1912 = vadd.f32 %v1833, %v1911
        %v1913 = vpop.f32.mrb[0].mxu0
        %1914 = vmatprep.mubr.f32.mxu0 0.0
        %1915 = vmatmul.mubr.f32.gmra.mrb[0].mxu0 %v1799
        %v1916 = vpop.f32.mrb[0].mxu0
        %v1917 = vadd.f32 %v1833, %v1916
        %v1918 = vpop.f32.mrb[0].mxu0
        %1919 = vmatprep.mubr.f32.mxu0 0.0
        %1920 = vmatmul.mubr.f32.gmra.mrb[0].mxu0 %v1800
        %v1921 = vpop.f32.mrb[0].mxu0
        %v1922 = vadd.f32 %v1833, %v1921
        %v1923 = vpop.f32.mrb[0].mxu0
        %1924 = vmatprep.mubr.f32.mxu0 0.0
        %1925 = vmatmul.mubr.f32.gmra.mrb[0].mxu0 %v1801
        %v1926 = vpop.f32.mrb[0].mxu0
        %v1927 = vadd.f32 %v1833, %v1926
        %v1928 = vpop.f32.mrb[0].mxu0
        %1929 = vmatprep.mubr.f32.mxu0 0.0
        %1930 = vmatmul.mubr.f32.gmra.mrb[0].mxu0 %v1802
        %v1931 = vpop.f32.mrb[0].mxu0
        %v1932 = vadd.f32 %v1833, %v1931
        %v1933 = vpop.f32.mrb[0].mxu0
        %1934 = vmatprep.mubr.f32.mxu0 0.0
        %1935 = vmatmul.mubr.f32.gmra.mrb[0].mxu0 %v1803
        %v1936 = vpop.f32.mrb[0].mxu0
        %v1937 = vadd.f32 %v1833, %v1936
        %v1938 = vpop.f32.mrb[0].mxu0
        %1939 = vdwg.mxu0
        %v1940 = vadd.f32 %v1902, %v1804
        %v1941 = vadd.f32 %v1907, %v1805
        %v1942 = vadd.f32 %v1912, %v1806
        %v1943 = vadd.f32 %v1917, %v1807
        %v1944 = vadd.f32 %v1922, %v1808
        %v1945 = vadd.f32 %v1927, %v1809
        %v1946 = vadd.f32 %v1932, %v1810
        %v1947 = vadd.f32 %v1937, %v1811
        %v1948 = vmax.f32 %v1940, 0.0
        %v1949 = vmax.f32 %v1941, 0.0
        %v1950 = vmax.f32 %v1942, 0.0
        %v1951 = vmax.f32 %v1943, 0.0
        %v1952 = vmax.f32 %v1944, 0.0
        %v1953 = vmax.f32 %v1945, 0.0
        %v1954 = vmax.f32 %v1946, 0.0
        %v1955 = vmax.f32 %v1947, 0.0
        %1956 = vst.msk [vmem:[%s285] sm:$0xff] %vm320, %v1948
        %1957 = vst.msk [vmem:[%s285 + $0x8] sm:$0xff] %vm320, %v1949
        %1958 = vst.msk [vmem:[%s285 + $0x10] sm:$0xff] %vm320, %v1950
        %1959 = vst.msk [vmem:[%s285 + $0x18] sm:$0xff] %vm320, %v1951
        %1960 = vst.msk [vmem:[%s285 + $0x20] sm:$0xff] %vm320, %v1952
        %1961 = vst.msk [vmem:[%s285 + $0x28] sm:$0xff] %vm320, %v1953
        %1962 = vst.msk [vmem:[%s285 + $0x30] sm:$0xff] %vm320, %v1954
        %1963 = vst.msk [vmem:[%s285 + $0x38] sm:$0xff] %vm320, %v1955
        %s1964 = sand.u32 %s195, 1
        %s1965 = scalar_lea.sflag [#allocation4], %s1964
        %s1966 = sand.u32 %s195, 1
        %s1967 = smul.addr %s1966, 64
        %s1968 = scalar_lea.vmem [#allocation3], %s1967
        // Predicated region
        $region57: #{bottleneck_forward.1} parent=47 // pred_check
          %p1969 = pneg %p205
        $region58: #{bottleneck_forward.1} parent=47 // pred_check_branch
          %1971 = sbr.rel (%p1969) target = $region60
        $region59: #{bottleneck_forward.1} parent=47 // pred_region
          %s1972 = smul.u32 4, %s26
          %s1974 = ssub.s32 1024, 1024
          %1975 = vsyncadd %s1965, %s1974
          %s1976 = smul.addr %s1972, 2
          %s1977 = smul.addr %s25, 32
          %s1978 = sadd.s32 %s1976, %s1977
          %s1979 = smul.addr %s1978, 128
          %s1980 = scalar_lea.hbm %s7, %s1979
          %s1981 = sshll.u32 %s1968, 4
          %s1982 = int_to_ptr.vmem [resolvable:$true] %s1981
          %1987 = dma.vmem_to_hbm [thread:$0]  %s1982, 1024, %s1980, %s1965, 128, 128, 8
        $region60: #{bottleneck_forward.1} parent=47 // pred_fallthru
          _
      $region48: #{bottleneck_forward.1} parent=5 // pred_fallthru
        _
      %p1988 = scmp.le.s32.totalorder 2, %s16
      // Predicated region
      $region61: #{bottleneck_forward.1} parent=5 // pred_check
        %p1989 = pneg %p1988
      $region62: #{bottleneck_forward.1} parent=5 // pred_check_branch
        %1991 = sbr.rel (%p1989) target = $region64
      $region63: #{bottleneck_forward.1} parent=5 // pred_region
        %s1992 = ssub.s32 %s16, 2
        // Predicated region
        $region65: #{bottleneck_forward.1} parent=63 // pred_check
          %p1993 = pneg %p211
        $region66: #{bottleneck_forward.1} parent=63 // pred_check_branch
          %1995 = sbr.rel (%p1993) target = $region68
        $region67: #{bottleneck_forward.1} parent=63 // pred_region
          %s1996 = sand.u32 %s196, 1
          %s1997 = scalar_lea.sflag [#allocation4], %s1996
          %s1998 = sand.u32 %s196, 1
          %s1999 = smul.addr %s1998, 64
          %s2000 = scalar_lea.vmem [#allocation3], %s1999
          %2001 = dma.done %s1997, 1024
        $region68: #{bottleneck_forward.1} parent=63 // pred_fallthru
          _
      $region64: #{bottleneck_forward.1} parent=5 // pred_fallthru
        _
    $region6: #{bottleneck_forward.1} parent=1 // loop_footer
      %s20 = sadd.s32 1, %s16
    $region7: #{bottleneck_forward.1} parent=1 // loop_footer_branch
      %15 = sbr.rel target = $region3
    $region8: #{bottleneck_forward.1} parent=1 // loop_exit
      _
    %2002 = vsyncpa [#allocation4], 1
    %s2003 = scalar_lea.sflag [#allocation4], 1
    %2004 = vsyncpa %s2003, 1

</llo_original>
